<compile_context>
chip_gen: v6e
topology: v6e:2x2x1
jax: 0.10.0
libtpu: 0.0.40
codegen_flags: <defaults>
</compile_context>

<pallas_src>
import functools
import math

import numpy as np
import jax
import jax.numpy as jnp
from jax.experimental import pallas as pl
from jax.experimental.pallas import tpu as pltpu


_A = -0.75        # PyTorch bicubic kernel coefficient
_BN_EPS = 1e-5    # PyTorch BatchNorm2d default eps


def _cubic1(x):
    return ((_A + 2.0) * x - (_A + 3.0)) * x * x + 1.0


def _cubic2(x):
    return ((_A * x - 5.0 * _A) * x + 8.0 * _A) * x - 4.0 * _A


@functools.lru_cache(maxsize=None)
def bicubic_matrix(n_in, n_out):
    """Dense (n_out, n_in) 1-D bicubic resize operator (PyTorch align_corners=False)."""
    W = np.zeros((n_out, n_in), dtype=np.float64)
    scale = n_in / n_out
    for o in range(n_out):
        src = scale * (o + 0.5) - 0.5          # cubic source-index rule
        f = math.floor(src)
        t = src - f
        w = (_cubic2(t + 1.0), _cubic1(t), _cubic1(1.0 - t), _cubic2(2.0 - t))
        for k in range(4):
            idx = min(max(f - 1 + k, 0), n_in - 1)   # clamped border access
            W[o, idx] += w[k]
    return W.astype(np.float32)


# ----------------------------------------------------------------------------
# Kernel 1: per-image separable bicubic resize + 1x1 conv + BN partial stats.
# ----------------------------------------------------------------------------
def _interp_conv_stats_kernel(x_ref, wwt_ref, wh_ref, wc_ref,
                              z_ref, st_ref, yflat_ref, *, compute_dtype):
    # x_ref    : (1, Cin, Hin, Win)   f32            one batch image (NCHW slab)
    # wwt_ref  : (Win, Wout)          compute_dtype  Ww^T
    # wh_ref   : (Hout, Hin)          compute_dtype  Wh
    # wc_ref   : (Cout, Cin)          compute_dtype  1x1 conv weight
    # z_ref    : (1, Cout, Hout*Wout) f32            pre-BN conv output (lane-dense)
    # st_ref   : (1, Cout, 2)         f32            per-channel [sum, sum-of-squares]
    # yflat_ref: (Cin, Hout*Wout)     f32            VMEM scratch (interp result)
    cin = x_ref.shape[1]
    wout = wwt_ref.shape[1]
    hout = wh_ref.shape[0]

    x = x_ref[0]                 # (Cin, Hin, Win) f32
    wwt = wwt_ref[...]
    wh = wh_ref[...]

    # Separable bicubic resize, one channel at a time (Cin is small -> static unroll):
    #   yc = Wh @ (x_c @ Ww^T)   -- two 2-D MXU matmuls with f32 accumulation.
    # The (Hout, Wout) result is laid row-by-row into the lane-dense (Cin, Hout*Wout)
    # scratch (explicit flatten: avoids relying on in-kernel reshape lowering).
    for c in range(cin):
        xc = x[c].astype(compute_dtype)                                   # (Hin, Win)
        a = jnp.dot(xc, wwt, preferred_element_type=jnp.float32)          # (Hin, Wout)
        yc = jnp.dot(wh, a.astype(compute_dtype),
                     preferred_element_type=jnp.float32)                  # (Hout, Wout)
        for ho in range(hout):
            yflat_ref[c:c + 1, ho * wout:(ho + 1) * wout] = yc[ho:ho + 1, :]

    # 1x1 convolution == channel matmul; output is lane-dense over Hout*Wout.
    z = jnp.dot(wc_ref[...], yflat_ref[...].astype(compute_dtype),
                preferred_element_type=jnp.float32)                        # (Cout, Pout)
    z_ref[0] = z

    # Partial BatchNorm statistics for this image (cross-lane reductions, f32).
    s1 = jnp.sum(z, axis=1, keepdims=True)                                 # (Cout, 1)
    s2 = jnp.sum(z * z, axis=1, keepdims=True)                             # (Cout, 1)
    st_ref[0] = jnp.concatenate([s1, s2], axis=1)                          # (Cout, 2)


# ----------------------------------------------------------------------------
# Kernel 2: fused BN scale/shift + ReLU, lane-tiled over the spatial axis.
# ----------------------------------------------------------------------------
def _bn_relu_kernel(z_ref, scale_ref, shift_ref, o_ref):
    # z_ref / o_ref : (1, Cout, TILE) f32 ; scale_ref / shift_ref : (Cout, 1) f32
    o_ref[0] = jnp.maximum(z_ref[0] * scale_ref[...] + shift_ref[...], 0.0)


def _pick_lane_tile(p):
    for t in (512, 1024, 256, 128):
        if p % t == 0:
            return t
    return p


# ----------------------------------------------------------------------------
# Wrapper: parameter / layout glue in plain JAX, hot path in Pallas.
# ----------------------------------------------------------------------------
def interp_forward(feature, target_size, params, interp_mode="bicubic",
                   matmul_dtype=jnp.bfloat16):
    """ReLU(BatchNorm2d(Conv2d_1x1(bicubic_resize(feature, target_size)))).

    BatchNorm2d uses training-mode batch statistics (biased variance), matching the
    forward pass of a freshly-constructed PyTorch module.
    """
    assert interp_mode == "bicubic", "only bicubic is implemented"
    N, Cin, Hin, Win = feature.shape
    Hout, Wout = int(target_size[0]), int(target_size[1])
    Pout = Hout * Wout

    conv_w = jnp.asarray(params["conv_w"], dtype=jnp.float32)
    Cout = conv_w.shape[0]
    gamma = jnp.asarray(params["bn_gamma"], dtype=jnp.float32)
    beta = jnp.asarray(params["bn_beta"], dtype=jnp.float32)
    # NOTE: the conv bias is exactly cancelled by the training-mode BN mean
    # subtraction, so it is dropped from the fused computation.

    # Separable bicubic operators (host-side, cached). Never build kron(Wh, Ww).
    wh = jnp.asarray(bicubic_matrix(Hin, Hout)).astype(matmul_dtype)      # (Hout, Hin)
    wwt = jnp.asarray(bicubic_matrix(Win, Wout).T).astype(matmul_dtype)   # (Win, Wout)
    wc = conv_w.reshape(Cout, Cin).astype(matmul_dtype)                   # (Cout, Cin)

    x = feature.astype(jnp.float32)                                       # NCHW

    itemsize = jnp.dtype(matmul_dtype).itemsize
    cost1 = pl.CostEstimate(
        flops=int(N * (2 * Cin * Hin * Win * Wout          # width interp
                       + 2 * Cin * Hout * Hin * Wout       # height interp
                       + 2 * Cout * Cin * Pout             # 1x1 conv
                       + 3 * Cout * Pout)),                 # stats
        transcendentals=0,
        bytes_accessed=int(4 * N * Cin * Hin * Win + 4 * N * Cout * Pout
                           + 4 * N * Cout * 2
                           + itemsize * (wh.size + wwt.size + wc.size)))

    kernel1 = functools.partial(_interp_conv_stats_kernel, compute_dtype=matmul_dtype)
    z, stats = pl.pallas_call(
        kernel1,
        out_shape=(jax.ShapeDtypeStruct((N, Cout, Pout), jnp.float32),
                   jax.ShapeDtypeStruct((N, Cout, 2), jnp.float32)),
        grid_spec=pltpu.PrefetchScalarGridSpec(
            num_scalar_prefetch=0,
            grid=(N,),
            in_specs=[
                pl.BlockSpec((1, Cin, Hin, Win), lambda n: (n, 0, 0, 0)),
                pl.BlockSpec((Win, Wout), lambda n: (0, 0)),
                pl.BlockSpec((Hout, Hin), lambda n: (0, 0)),
                pl.BlockSpec((Cout, Cin), lambda n: (0, 0)),
            ],
            out_specs=[
                pl.BlockSpec((1, Cout, Pout), lambda n: (n, 0, 0)),
                pl.BlockSpec((1, Cout, 2), lambda n: (n, 0, 0)),
            ],
            scratch_shapes=[pltpu.VMEM((Cin, Pout), jnp.float32)],
        ),
        compiler_params=pltpu.CompilerParams(
            dimension_semantics=("parallel",),
            vmem_limit_bytes=32 * 1024 * 1024),
        cost_estimate=cost1,
    )(x, wwt, wh, wc)

    # Global per-channel BN statistics + folded affine (tiny (Cout,)-sized XLA math).
    sums = jnp.sum(stats, axis=0)                                   # (Cout, 2)
    cnt = float(N * Pout)
    mean = sums[:, 0] / cnt
    var = jnp.maximum(sums[:, 1] / cnt - mean * mean, 0.0)          # biased variance
    inv_std = jax.lax.rsqrt(var + _BN_EPS)
    scale = (gamma * inv_std).reshape(Cout, 1)
    shift = (beta - gamma * inv_std * mean).reshape(Cout, 1)

    tile = _pick_lane_tile(Pout)
    cost2 = pl.CostEstimate(
        flops=int(3 * N * Cout * Pout), transcendentals=0,
        bytes_accessed=int(8 * N * Cout * Pout + 8 * Cout))
    out = pl.pallas_call(
        _bn_relu_kernel,
        out_shape=jax.ShapeDtypeStruct((N, Cout, Pout), jnp.float32),
        grid_spec=pltpu.PrefetchScalarGridSpec(
            num_scalar_prefetch=0,
            grid=(N, Pout // tile),
            in_specs=[
                pl.BlockSpec((1, Cout, tile), lambda n, t: (n, 0, t)),
                pl.BlockSpec((Cout, 1), lambda n, t: (0, 0)),
                pl.BlockSpec((Cout, 1), lambda n, t: (0, 0)),
            ],
            out_specs=pl.BlockSpec((1, Cout, tile), lambda n, t: (n, 0, t)),
        ),
        compiler_params=pltpu.CompilerParams(
            dimension_semantics=("parallel", "parallel"),
            vmem_limit_bytes=32 * 1024 * 1024),
        cost_estimate=cost2,
    )(z, scale, shift)

    # (N, Cout, Hout*Wout) is already channels-first -> NCHW via a free reshape.
    return out.reshape(N, Cout, Hout, Wout)


# Pure-JAX reference for the same math (sanity check only).
def _reference(feature, target_size, params):
    N, Cin, Hin, Win = feature.shape
    Hout, Wout = target_size
    Cout = params["conv_w"].shape[0]
    Wh = jnp.asarray(bicubic_matrix(Hin, Hout))
    Ww = jnp.asarray(bicubic_matrix(Win, Wout))
    y = jnp.einsum("oh,nchw,pw->ncop", Wh, feature, Ww)                   # bicubic resize
    z = jnp.einsum("oc,nchw->nohw", params["conv_w"].reshape(Cout, Cin), y)
    z = z + params["conv_b"].reshape(1, Cout, 1, 1)
    mean = jnp.mean(z, axis=(0, 2, 3), keepdims=True)
    var = jnp.mean(jnp.square(z - mean), axis=(0, 2, 3), keepdims=True)
    zn = (z - mean) * jax.lax.rsqrt(var + _BN_EPS)
    zn = zn * params["bn_gamma"].reshape(1, Cout, 1, 1) + params["bn_beta"].reshape(1, Cout, 1, 1)
    return jnp.maximum(zn, 0.0)


if __name__ == "__main__":
    key = jax.random.PRNGKey(0)
    k_feat, k_w = jax.random.split(key)

    N, Cin, Hin, Win = 2, 4, 16, 16
    Cout = 8
    target_size = (32, 32)

    feature = jax.random.normal(k_feat, (N, Cin, Hin, Win), dtype=jnp.float32)

    # Deterministic parameter init mirroring the PyTorch __init__:
    #   conv weight ~ N(0, 0.01), conv bias = 0, BN gamma = 1, beta = 0.
    params = {
        "conv_w": jax.random.normal(k_w, (Cout, Cin, 1, 1), dtype=jnp.float32) * 0.01,
        "conv_b": jnp.zeros((Cout,), dtype=jnp.float32),
        "bn_gamma": jnp.ones((Cout,), dtype=jnp.float32),
        "bn_beta": jnp.zeros((Cout,), dtype=jnp.float32),
    }

    out = jax.block_until_ready(interp_forward(feature, target_size, params))
    assert out.shape == (N, Cout, target_size[0], target_size[1]), out.shape
    assert bool(jnp.all(jnp.isfinite(out)))

    ref = jax.block_until_ready(_reference(feature, target_size, params))

    # f32 matmul path: tight check against the pure-JAX reference.
    out_f32 = jax.block_until_ready(
        interp_forward(feature, target_size, params, matmul_dtype=jnp.float32))
    assert bool(jnp.allclose(out_f32, ref, rtol=1e-3, atol=1e-3)), "f32 path mismatch"

    # Default bf16-MXU path: loose check (bf16 operands, f32 accumulation).
    assert bool(jnp.allclose(out, ref, rtol=5e-2, atol=5e-2)), "bf16 path mismatch"

    print("KERNEL_OK")
</pallas_src>

<mosaic_0001>
module attributes {stable_mosaic.version = 11 : i64} {
  func.func @_interp_conv_stats_kernel(%arg0: i32, %arg1: memref<1x4x16x16xf32, #tpu.memory_space<vmem>>, %arg2: memref<16x32xbf16, #tpu.memory_space<vmem>>, %arg3: memref<32x16xbf16, #tpu.memory_space<vmem>>, %arg4: memref<8x4xbf16, #tpu.memory_space<vmem>>, %arg5: memref<1x8x1024xf32, #tpu.memory_space<vmem>>, %arg6: memref<1x8x2xf32, #tpu.memory_space<vmem>>, %arg7: memref<4x1024xf32, #tpu.memory_space<vmem>>) attributes {dimension_semantics = [#tpu.dimension_semantics<parallel>], iteration_bounds = array<i64: 2>, scalar_prefetch = 0 : i64, scratch_operands = 1 : i64, tpu.core_type = #tpu.core_type<tc>, window_params = [{transform_indices = @transform_0, window_bounds = array<i64: 1, 4, 16, 16>}, {pipeline_mode = #tpu.pipeline_mode<synchronous>, transform_indices = @transform_1, window_bounds = array<i64: 16, 32>}, {pipeline_mode = #tpu.pipeline_mode<synchronous>, transform_indices = @transform_2, window_bounds = array<i64: 32, 16>}, {pipeline_mode = #tpu.pipeline_mode<synchronous>, transform_indices = @transform_3, window_bounds = array<i64: 8, 4>}, {transform_indices = @transform_4, window_bounds = array<i64: 1, 8, 1024>}, {transform_indices = @transform_5, window_bounds = array<i64: 1, 8, 2>}]} {
    %c0 = arith.constant 0 : index
    %c0_0 = arith.constant 0 : index
    %c0_1 = arith.constant 0 : index
    %c0_2 = arith.constant 0 : index
    %0 = vector.load %arg1[%c0, %c0_0, %c0_1, %c0_2] : memref<1x4x16x16xf32, #tpu.memory_space<vmem>>, vector<1x4x16x16xf32>
    %1 = vector.shape_cast %0 : vector<1x4x16x16xf32> to vector<4x16x16xf32>
    %c0_3 = arith.constant 0 : index
    %c0_4 = arith.constant 0 : index
    %2 = vector.load %arg2[%c0_3, %c0_4] : memref<16x32xbf16, #tpu.memory_space<vmem>>, vector<16x32xbf16>
    %c0_5 = arith.constant 0 : index
    %c0_6 = arith.constant 0 : index
    %3 = vector.load %arg3[%c0_5, %c0_6] : memref<32x16xbf16, #tpu.memory_space<vmem>>, vector<32x16xbf16>
    %4 = vector.extract_strided_slice %1 {offsets = [0, 0, 0], sizes = [1, 16, 16], strides = [1, 1, 1]} : vector<4x16x16xf32> to vector<1x16x16xf32>
    %5 = vector.shape_cast %4 : vector<1x16x16xf32> to vector<16x16xf32>
    %6 = arith.truncf %5 : vector<16x16xf32> to vector<16x16xbf16>
    %cst = arith.constant dense<0.000000e+00> : vector<16x32xf32>
    %7 = tpu.matmul %6, %2, %cst {dimension_numbers = #tpu.dot_dimension_numbers<[1], [0], [0], [1], [0, 0, 1, 1], [], []>} : vector<16x16xbf16>, vector<16x32xbf16>, vector<16x32xf32> -> vector<16x32xf32>
    %8 = arith.truncf %7 : vector<16x32xf32> to vector<16x32xbf16>
    %cst_7 = arith.constant dense<0.000000e+00> : vector<32x32xf32>
    %9 = tpu.matmul %3, %8, %cst_7 {dimension_numbers = #tpu.dot_dimension_numbers<[1], [0], [0], [1], [0, 0, 1, 1], [], []>} : vector<32x16xbf16>, vector<16x32xbf16>, vector<32x32xf32> -> vector<32x32xf32>
    %10 = vector.extract_strided_slice %9 {offsets = [0, 0], sizes = [1, 32], strides = [1, 1]} : vector<32x32xf32> to vector<1x32xf32>
    %c0_8 = arith.constant 0 : index
    %c0_9 = arith.constant 0 : index
    %11 = vector.load %arg7[%c0_8, %c0_9] : memref<4x1024xf32, #tpu.memory_space<vmem>>, vector<1x32xf32>
    tpu.vector_store %arg7[%c0_8, %c0_9], %10 {strides = array<i32>} : memref<4x1024xf32, #tpu.memory_space<vmem>>, vector<1x32xf32>,
    %12 = vector.extract_strided_slice %9 {offsets = [1, 0], sizes = [1, 32], strides = [1, 1]} : vector<32x32xf32> to vector<1x32xf32>
    %c0_10 = arith.constant 0 : index
    %c32 = arith.constant 32 : index
    %13 = vector.load %arg7[%c0_10, %c32] : memref<4x1024xf32, #tpu.memory_space<vmem>>, vector<1x32xf32>
    tpu.vector_store %arg7[%c0_10, %c32], %12 {strides = array<i32>} : memref<4x1024xf32, #tpu.memory_space<vmem>>, vector<1x32xf32>,
    %14 = vector.extract_strided_slice %9 {offsets = [2, 0], sizes = [1, 32], strides = [1, 1]} : vector<32x32xf32> to vector<1x32xf32>
    %c0_11 = arith.constant 0 : index
    %c64 = arith.constant 64 : index
    %15 = vector.load %arg7[%c0_11, %c64] : memref<4x1024xf32, #tpu.memory_space<vmem>>, vector<1x32xf32>
    tpu.vector_store %arg7[%c0_11, %c64], %14 {strides = array<i32>} : memref<4x1024xf32, #tpu.memory_space<vmem>>, vector<1x32xf32>,
    %16 = vector.extract_strided_slice %9 {offsets = [3, 0], sizes = [1, 32], strides = [1, 1]} : vector<32x32xf32> to vector<1x32xf32>
    %c0_12 = arith.constant 0 : index
    %c96 = arith.constant 96 : index
    %17 = vector.load %arg7[%c0_12, %c96] : memref<4x1024xf32, #tpu.memory_space<vmem>>, vector<1x32xf32>
    tpu.vector_store %arg7[%c0_12, %c96], %16 {strides = array<i32>} : memref<4x1024xf32, #tpu.memory_space<vmem>>, vector<1x32xf32>,
    %18 = vector.extract_strided_slice %9 {offsets = [4, 0], sizes = [1, 32], strides = [1, 1]} : vector<32x32xf32> to vector<1x32xf32>
    %c0_13 = arith.constant 0 : index
    %c128 = arith.constant 128 : index
    %19 = vector.load %arg7[%c0_13, %c128] : memref<4x1024xf32, #tpu.memory_space<vmem>>, vector<1x32xf32>
    tpu.vector_store %arg7[%c0_13, %c128], %18 {strides = array<i32>} : memref<4x1024xf32, #tpu.memory_space<vmem>>, vector<1x32xf32>,
    %20 = vector.extract_strided_slice %9 {offsets = [5, 0], sizes = [1, 32], strides = [1, 1]} : vector<32x32xf32> to vector<1x32xf32>
    %c0_14 = arith.constant 0 : index
    %c160 = arith.constant 160 : index
    %21 = vector.load %arg7[%c0_14, %c160] : memref<4x1024xf32, #tpu.memory_space<vmem>>, vector<1x32xf32>
    tpu.vector_store %arg7[%c0_14, %c160], %20 {strides = array<i32>} : memref<4x1024xf32, #tpu.memory_space<vmem>>, vector<1x32xf32>,
    %22 = vector.extract_strided_slice %9 {offsets = [6, 0], sizes = [1, 32], strides = [1, 1]} : vector<32x32xf32> to vector<1x32xf32>
    %c0_15 = arith.constant 0 : index
    %c192 = arith.constant 192 : index
    %23 = vector.load %arg7[%c0_15, %c192] : memref<4x1024xf32, #tpu.memory_space<vmem>>, vector<1x32xf32>
    tpu.vector_store %arg7[%c0_15, %c192], %22 {strides = array<i32>} : memref<4x1024xf32, #tpu.memory_space<vmem>>, vector<1x32xf32>,
    %24 = vector.extract_strided_slice %9 {offsets = [7, 0], sizes = [1, 32], strides = [1, 1]} : vector<32x32xf32> to vector<1x32xf32>
    %c0_16 = arith.constant 0 : index
    %c224 = arith.constant 224 : index
    %25 = vector.load %arg7[%c0_16, %c224] : memref<4x1024xf32, #tpu.memory_space<vmem>>, vector<1x32xf32>
    tpu.vector_store %arg7[%c0_16, %c224], %24 {strides = array<i32>} : memref<4x1024xf32, #tpu.memory_space<vmem>>, vector<1x32xf32>,
    %26 = vector.extract_strided_slice %9 {offsets = [8, 0], sizes = [1, 32], strides = [1, 1]} : vector<32x32xf32> to vector<1x32xf32>
    %c0_17 = arith.constant 0 : index
    %c256 = arith.constant 256 : index
    %27 = vector.load %arg7[%c0_17, %c256] : memref<4x1024xf32, #tpu.memory_space<vmem>>, vector<1x32xf32>
    tpu.vector_store %arg7[%c0_17, %c256], %26 {strides = array<i32>} : memref<4x1024xf32, #tpu.memory_space<vmem>>, vector<1x32xf32>,
    %28 = vector.extract_strided_slice %9 {offsets = [9, 0], sizes = [1, 32], strides = [1, 1]} : vector<32x32xf32> to vector<1x32xf32>
    %c0_18 = arith.constant 0 : index
    %c288 = arith.constant 288 : index
    %29 = vector.load %arg7[%c0_18, %c288] : memref<4x1024xf32, #tpu.memory_space<vmem>>, vector<1x32xf32>
    tpu.vector_store %arg7[%c0_18, %c288], %28 {strides = array<i32>} : memref<4x1024xf32, #tpu.memory_space<vmem>>, vector<1x32xf32>,
    %30 = vector.extract_strided_slice %9 {offsets = [10, 0], sizes = [1, 32], strides = [1, 1]} : vector<32x32xf32> to vector<1x32xf32>
    %c0_19 = arith.constant 0 : index
    %c320 = arith.constant 320 : index
    %31 = vector.load %arg7[%c0_19, %c320] : memref<4x1024xf32, #tpu.memory_space<vmem>>, vector<1x32xf32>
    tpu.vector_store %arg7[%c0_19, %c320], %30 {strides = array<i32>} : memref<4x1024xf32, #tpu.memory_space<vmem>>, vector<1x32xf32>,
    %32 = vector.extract_strided_slice %9 {offsets = [11, 0], sizes = [1, 32], strides = [1, 1]} : vector<32x32xf32> to vector<1x32xf32>
    %c0_20 = arith.constant 0 : index
    %c352 = arith.constant 352 : index
    %33 = vector.load %arg7[%c0_20, %c352] : memref<4x1024xf32, #tpu.memory_space<vmem>>, vector<1x32xf32>
    tpu.vector_store %arg7[%c0_20, %c352], %32 {strides = array<i32>} : memref<4x1024xf32, #tpu.memory_space<vmem>>, vector<1x32xf32>,
    %34 = vector.extract_strided_slice %9 {offsets = [12, 0], sizes = [1, 32], strides = [1, 1]} : vector<32x32xf32> to vector<1x32xf32>
    %c0_21 = arith.constant 0 : index
    %c384 = arith.constant 384 : index
    %35 = vector.load %arg7[%c0_21, %c384] : memref<4x1024xf32, #tpu.memory_space<vmem>>, vector<1x32xf32>
    tpu.vector_store %arg7[%c0_21, %c384], %34 {strides = array<i32>} : memref<4x1024xf32, #tpu.memory_space<vmem>>, vector<1x32xf32>,
    %36 = vector.extract_strided_slice %9 {offsets = [13, 0], sizes = [1, 32], strides = [1, 1]} : vector<32x32xf32> to vector<1x32xf32>
    %c0_22 = arith.constant 0 : index
    %c416 = arith.constant 416 : index
    %37 = vector.load %arg7[%c0_22, %c416] : memref<4x1024xf32, #tpu.memory_space<vmem>>, vector<1x32xf32>
    tpu.vector_store %arg7[%c0_22, %c416], %36 {strides = array<i32>} : memref<4x1024xf32, #tpu.memory_space<vmem>>, vector<1x32xf32>,
    %38 = vector.extract_strided_slice %9 {offsets = [14, 0], sizes = [1, 32], strides = [1, 1]} : vector<32x32xf32> to vector<1x32xf32>
    %c0_23 = arith.constant 0 : index
    %c448 = arith.constant 448 : index
    %39 = vector.load %arg7[%c0_23, %c448] : memref<4x1024xf32, #tpu.memory_space<vmem>>, vector<1x32xf32>
    tpu.vector_store %arg7[%c0_23, %c448], %38 {strides = array<i32>} : memref<4x1024xf32, #tpu.memory_space<vmem>>, vector<1x32xf32>,
    %40 = vector.extract_strided_slice %9 {offsets = [15, 0], sizes = [1, 32], strides = [1, 1]} : vector<32x32xf32> to vector<1x32xf32>
    %c0_24 = arith.constant 0 : index
    %c480 = arith.constant 480 : index
    %41 = vector.load %arg7[%c0_24, %c480] : memref<4x1024xf32, #tpu.memory_space<vmem>>, vector<1x32xf32>
    tpu.vector_store %arg7[%c0_24, %c480], %40 {strides = array<i32>} : memref<4x1024xf32, #tpu.memory_space<vmem>>, vector<1x32xf32>,
    %42 = vector.extract_strided_slice %9 {offsets = [16, 0], sizes = [1, 32], strides = [1, 1]} : vector<32x32xf32> to vector<1x32xf32>
    %c0_25 = arith.constant 0 : index
    %c512 = arith.constant 512 : index
    %43 = vector.load %arg7[%c0_25, %c512] : memref<4x1024xf32, #tpu.memory_space<vmem>>, vector<1x32xf32>
    tpu.vector_store %arg7[%c0_25, %c512], %42 {strides = array<i32>} : memref<4x1024xf32, #tpu.memory_space<vmem>>, vector<1x32xf32>,
    %44 = vector.extract_strided_slice %9 {offsets = [17, 0], sizes = [1, 32], strides = [1, 1]} : vector<32x32xf32> to vector<1x32xf32>
    %c0_26 = arith.constant 0 : index
    %c544 = arith.constant 544 : index
    %45 = vector.load %arg7[%c0_26, %c544] : memref<4x1024xf32, #tpu.memory_space<vmem>>, vector<1x32xf32>
    tpu.vector_store %arg7[%c0_26, %c544], %44 {strides = array<i32>} : memref<4x1024xf32, #tpu.memory_space<vmem>>, vector<1x32xf32>,
    %46 = vector.extract_strided_slice %9 {offsets = [18, 0], sizes = [1, 32], strides = [1, 1]} : vector<32x32xf32> to vector<1x32xf32>
    %c0_27 = arith.constant 0 : index
    %c576 = arith.constant 576 : index
    %47 = vector.load %arg7[%c0_27, %c576] : memref<4x1024xf32, #tpu.memory_space<vmem>>, vector<1x32xf32>
    tpu.vector_store %arg7[%c0_27, %c576], %46 {strides = array<i32>} : memref<4x1024xf32, #tpu.memory_space<vmem>>, vector<1x32xf32>,
    %48 = vector.extract_strided_slice %9 {offsets = [19, 0], sizes = [1, 32], strides = [1, 1]} : vector<32x32xf32> to vector<1x32xf32>
    %c0_28 = arith.constant 0 : index
    %c608 = arith.constant 608 : index
    %49 = vector.load %arg7[%c0_28, %c608] : memref<4x1024xf32, #tpu.memory_space<vmem>>, vector<1x32xf32>
    tpu.vector_store %arg7[%c0_28, %c608], %48 {strides = array<i32>} : memref<4x1024xf32, #tpu.memory_space<vmem>>, vector<1x32xf32>,
    %50 = vector.extract_strided_slice %9 {offsets = [20, 0], sizes = [1, 32], strides = [1, 1]} : vector<32x32xf32> to vector<1x32xf32>
    %c0_29 = arith.constant 0 : index
    %c640 = arith.constant 640 : index
    %51 = vector.load %arg7[%c0_29, %c640] : memref<4x1024xf32, #tpu.memory_space<vmem>>, vector<1x32xf32>
    tpu.vector_store %arg7[%c0_29, %c640], %50 {strides = array<i32>} : memref<4x1024xf32, #tpu.memory_space<vmem>>, vector<1x32xf32>,
    %52 = vector.extract_strided_slice %9 {offsets = [21, 0], sizes = [1, 32], strides = [1, 1]} : vector<32x32xf32> to vector<1x32xf32>
    %c0_30 = arith.constant 0 : index
    %c672 = arith.constant 672 : index
    %53 = vector.load %arg7[%c0_30, %c672] : memref<4x1024xf32, #tpu.memory_space<vmem>>, vector<1x32xf32>
    tpu.vector_store %arg7[%c0_30, %c672], %52 {strides = array<i32>} : memref<4x1024xf32, #tpu.memory_space<vmem>>, vector<1x32xf32>,
    %54 = vector.extract_strided_slice %9 {offsets = [22, 0], sizes = [1, 32], strides = [1, 1]} : vector<32x32xf32> to vector<1x32xf32>
    %c0_31 = arith.constant 0 : index
    %c704 = arith.constant 704 : index
    %55 = vector.load %arg7[%c0_31, %c704] : memref<4x1024xf32, #tpu.memory_space<vmem>>, vector<1x32xf32>
    tpu.vector_store %arg7[%c0_31, %c704], %54 {strides = array<i32>} : memref<4x1024xf32, #tpu.memory_space<vmem>>, vector<1x32xf32>,
    %56 = vector.extract_strided_slice %9 {offsets = [23, 0], sizes = [1, 32], strides = [1, 1]} : vector<32x32xf32> to vector<1x32xf32>
    %c0_32 = arith.constant 0 : index
    %c736 = arith.constant 736 : index
    %57 = vector.load %arg7[%c0_32, %c736] : memref<4x1024xf32, #tpu.memory_space<vmem>>, vector<1x32xf32>
    tpu.vector_store %arg7[%c0_32, %c736], %56 {strides = array<i32>} : memref<4x1024xf32, #tpu.memory_space<vmem>>, vector<1x32xf32>,
    %58 = vector.extract_strided_slice %9 {offsets = [24, 0], sizes = [1, 32], strides = [1, 1]} : vector<32x32xf32> to vector<1x32xf32>
    %c0_33 = arith.constant 0 : index
    %c768 = arith.constant 768 : index
    %59 = vector.load %arg7[%c0_33, %c768] : memref<4x1024xf32, #tpu.memory_space<vmem>>, vector<1x32xf32>
    tpu.vector_store %arg7[%c0_33, %c768], %58 {strides = array<i32>} : memref<4x1024xf32, #tpu.memory_space<vmem>>, vector<1x32xf32>,
    %60 = vector.extract_strided_slice %9 {offsets = [25, 0], sizes = [1, 32], strides = [1, 1]} : vector<32x32xf32> to vector<1x32xf32>
    %c0_34 = arith.constant 0 : index
    %c800 = arith.constant 800 : index
    %61 = vector.load %arg7[%c0_34, %c800] : memref<4x1024xf32, #tpu.memory_space<vmem>>, vector<1x32xf32>
    tpu.vector_store %arg7[%c0_34, %c800], %60 {strides = array<i32>} : memref<4x1024xf32, #tpu.memory_space<vmem>>, vector<1x32xf32>,
    %62 = vector.extract_strided_slice %9 {offsets = [26, 0], sizes = [1, 32], strides = [1, 1]} : vector<32x32xf32> to vector<1x32xf32>
    %c0_35 = arith.constant 0 : index
    %c832 = arith.constant 832 : index
    %63 = vector.load %arg7[%c0_35, %c832] : memref<4x1024xf32, #tpu.memory_space<vmem>>, vector<1x32xf32>
    tpu.vector_store %arg7[%c0_35, %c832], %62 {strides = array<i32>} : memref<4x1024xf32, #tpu.memory_space<vmem>>, vector<1x32xf32>,
    %64 = vector.extract_strided_slice %9 {offsets = [27, 0], sizes = [1, 32], strides = [1, 1]} : vector<32x32xf32> to vector<1x32xf32>
    %c0_36 = arith.constant 0 : index
    %c864 = arith.constant 864 : index
    %65 = vector.load %arg7[%c0_36, %c864] : memref<4x1024xf32, #tpu.memory_space<vmem>>, vector<1x32xf32>
    tpu.vector_store %arg7[%c0_36, %c864], %64 {strides = array<i32>} : memref<4x1024xf32, #tpu.memory_space<vmem>>, vector<1x32xf32>,
    %66 = vector.extract_strided_slice %9 {offsets = [28, 0], sizes = [1, 32], strides = [1, 1]} : vector<32x32xf32> to vector<1x32xf32>
    %c0_37 = arith.constant 0 : index
    %c896 = arith.constant 896 : index
    %67 = vector.load %arg7[%c0_37, %c896] : memref<4x1024xf32, #tpu.memory_space<vmem>>, vector<1x32xf32>
    tpu.vector_store %arg7[%c0_37, %c896], %66 {strides = array<i32>} : memref<4x1024xf32, #tpu.memory_space<vmem>>, vector<1x32xf32>,
    %68 = vector.extract_strided_slice %9 {offsets = [29, 0], sizes = [1, 32], strides = [1, 1]} : vector<32x32xf32> to vector<1x32xf32>
    %c0_38 = arith.constant 0 : index
    %c928 = arith.constant 928 : index
    %69 = vector.load %arg7[%c0_38, %c928] : memref<4x1024xf32, #tpu.memory_space<vmem>>, vector<1x32xf32>
    tpu.vector_store %arg7[%c0_38, %c928], %68 {strides = array<i32>} : memref<4x1024xf32, #tpu.memory_space<vmem>>, vector<1x32xf32>,
    %70 = vector.extract_strided_slice %9 {offsets = [30, 0], sizes = [1, 32], strides = [1, 1]} : vector<32x32xf32> to vector<1x32xf32>
    %c0_39 = arith.constant 0 : index
    %c960 = arith.constant 960 : index
    %71 = vector.load %arg7[%c0_39, %c960] : memref<4x1024xf32, #tpu.memory_space<vmem>>, vector<1x32xf32>
    tpu.vector_store %arg7[%c0_39, %c960], %70 {strides = array<i32>} : memref<4x1024xf32, #tpu.memory_space<vmem>>, vector<1x32xf32>,
    %72 = vector.extract_strided_slice %9 {offsets = [31, 0], sizes = [1, 32], strides = [1, 1]} : vector<32x32xf32> to vector<1x32xf32>
    %c0_40 = arith.constant 0 : index
    %c992 = arith.constant 992 : index
    %73 = vector.load %arg7[%c0_40, %c992] : memref<4x1024xf32, #tpu.memory_space<vmem>>, vector<1x32xf32>
    tpu.vector_store %arg7[%c0_40, %c992], %72 {strides = array<i32>} : memref<4x1024xf32, #tpu.memory_space<vmem>>, vector<1x32xf32>,
    %74 = vector.extract_strided_slice %1 {offsets = [1, 0, 0], sizes = [1, 16, 16], strides = [1, 1, 1]} : vector<4x16x16xf32> to vector<1x16x16xf32>
    %75 = vector.shape_cast %74 : vector<1x16x16xf32> to vector<16x16xf32>
    %76 = arith.truncf %75 : vector<16x16xf32> to vector<16x16xbf16>
    %cst_41 = arith.constant dense<0.000000e+00> : vector<16x32xf32>
    %77 = tpu.matmul %76, %2, %cst_41 {dimension_numbers = #tpu.dot_dimension_numbers<[1], [0], [0], [1], [0, 0, 1, 1], [], []>} : vector<16x16xbf16>, vector<16x32xbf16>, vector<16x32xf32> -> vector<16x32xf32>
    %78 = arith.truncf %77 : vector<16x32xf32> to vector<16x32xbf16>
    %cst_42 = arith.constant dense<0.000000e+00> : vector<32x32xf32>
    %79 = tpu.matmul %3, %78, %cst_42 {dimension_numbers = #tpu.dot_dimension_numbers<[1], [0], [0], [1], [0, 0, 1, 1], [], []>} : vector<32x16xbf16>, vector<16x32xbf16>, vector<32x32xf32> -> vector<32x32xf32>
    %80 = vector.extract_strided_slice %79 {offsets = [0, 0], sizes = [1, 32], strides = [1, 1]} : vector<32x32xf32> to vector<1x32xf32>
    %c1 = arith.constant 1 : index
    %c0_43 = arith.constant 0 : index
    %81 = vector.load %arg7[%c1, %c0_43] : memref<4x1024xf32, #tpu.memory_space<vmem>>, vector<1x32xf32>
    tpu.vector_store %arg7[%c1, %c0_43], %80 {strides = array<i32>} : memref<4x1024xf32, #tpu.memory_space<vmem>>, vector<1x32xf32>,
    %82 = vector.extract_strided_slice %79 {offsets = [1, 0], sizes = [1, 32], strides = [1, 1]} : vector<32x32xf32> to vector<1x32xf32>
    %c1_44 = arith.constant 1 : index
    %c32_45 = arith.constant 32 : index
    %83 = vector.load %arg7[%c1_44, %c32_45] : memref<4x1024xf32, #tpu.memory_space<vmem>>, vector<1x32xf32>
    tpu.vector_store %arg7[%c1_44, %c32_45], %82 {strides = array<i32>} : memref<4x1024xf32, #tpu.memory_space<vmem>>, vector<1x32xf32>,
    %84 = vector.extract_strided_slice %79 {offsets = [2, 0], sizes = [1, 32], strides = [1, 1]} : vector<32x32xf32> to vector<1x32xf32>
    %c1_46 = arith.constant 1 : index
    %c64_47 = arith.constant 64 : index
    %85 = vector.load %arg7[%c1_46, %c64_47] : memref<4x1024xf32, #tpu.memory_space<vmem>>, vector<1x32xf32>
    tpu.vector_store %arg7[%c1_46, %c64_47], %84 {strides = array<i32>} : memref<4x1024xf32, #tpu.memory_space<vmem>>, vector<1x32xf32>,
    %86 = vector.extract_strided_slice %79 {offsets = [3, 0], sizes = [1, 32], strides = [1, 1]} : vector<32x32xf32> to vector<1x32xf32>
    %c1_48 = arith.constant 1 : index
    %c96_49 = arith.constant 96 : index
    %87 = vector.load %arg7[%c1_48, %c96_49] : memref<4x1024xf32, #tpu.memory_space<vmem>>, vector<1x32xf32>
    tpu.vector_store %arg7[%c1_48, %c96_49], %86 {strides = array<i32>} : memref<4x1024xf32, #tpu.memory_space<vmem>>, vector<1x32xf32>,
    %88 = vector.extract_strided_slice %79 {offsets = [4, 0], sizes = [1, 32], strides = [1, 1]} : vector<32x32xf32> to vector<1x32xf32>
    %c1_50 = arith.constant 1 : index
    %c128_51 = arith.constant 128 : index
    %89 = vector.load %arg7[%c1_50, %c128_51] : memref<4x1024xf32, #tpu.memory_space<vmem>>, vector<1x32xf32>
    tpu.vector_store %arg7[%c1_50, %c128_51], %88 {strides = array<i32>} : memref<4x1024xf32, #tpu.memory_space<vmem>>, vector<1x32xf32>,
    %90 = vector.extract_strided_slice %79 {offsets = [5, 0], sizes = [1, 32], strides = [1, 1]} : vector<32x32xf32> to vector<1x32xf32>
    %c1_52 = arith.constant 1 : index
    %c160_53 = arith.constant 160 : index
    %91 = vector.load %arg7[%c1_52, %c160_53] : memref<4x1024xf32, #tpu.memory_space<vmem>>, vector<1x32xf32>
    tpu.vector_store %arg7[%c1_52, %c160_53], %90 {strides = array<i32>} : memref<4x1024xf32, #tpu.memory_space<vmem>>, vector<1x32xf32>,
    %92 = vector.extract_strided_slice %79 {offsets = [6, 0], sizes = [1, 32], strides = [1, 1]} : vector<32x32xf32> to vector<1x32xf32>
    %c1_54 = arith.constant 1 : index
    %c192_55 = arith.constant 192 : index
    %93 = vector.load %arg7[%c1_54, %c192_55] : memref<4x1024xf32, #tpu.memory_space<vmem>>, vector<1x32xf32>
    tpu.vector_store %arg7[%c1_54, %c192_55], %92 {strides = array<i32>} : memref<4x1024xf32, #tpu.memory_space<vmem>>, vector<1x32xf32>,
    %94 = vector.extract_strided_slice %79 {offsets = [7, 0], sizes = [1, 32], strides = [1, 1]} : vector<32x32xf32> to vector<1x32xf32>
    %c1_56 = arith.constant 1 : index
    %c224_57 = arith.constant 224 : index
    %95 = vector.load %arg7[%c1_56, %c224_57] : memref<4x1024xf32, #tpu.memory_space<vmem>>, vector<1x32xf32>
    tpu.vector_store %arg7[%c1_56, %c224_57], %94 {strides = array<i32>} : memref<4x1024xf32, #tpu.memory_space<vmem>>, vector<1x32xf32>,
    %96 = vector.extract_strided_slice %79 {offsets = [8, 0], sizes = [1, 32], strides = [1, 1]} : vector<32x32xf32> to vector<1x32xf32>
    %c1_58 = arith.constant 1 : index
    %c256_59 = arith.constant 256 : index
    %97 = vector.load %arg7[%c1_58, %c256_59] : memref<4x1024xf32, #tpu.memory_space<vmem>>, vector<1x32xf32>
    tpu.vector_store %arg7[%c1_58, %c256_59], %96 {strides = array<i32>} : memref<4x1024xf32, #tpu.memory_space<vmem>>, vector<1x32xf32>,
    %98 = vector.extract_strided_slice %79 {offsets = [9, 0], sizes = [1, 32], strides = [1, 1]} : vector<32x32xf32> to vector<1x32xf32>
    %c1_60 = arith.constant 1 : index
    %c288_61 = arith.constant 288 : index
    %99 = vector.load %arg7[%c1_60, %c288_61] : memref<4x1024xf32, #tpu.memory_space<vmem>>, vector<1x32xf32>
    tpu.vector_store %arg7[%c1_60, %c288_61], %98 {strides = array<i32>} : memref<4x1024xf32, #tpu.memory_space<vmem>>, vector<1x32xf32>,
    %100 = vector.extract_strided_slice %79 {offsets = [10, 0], sizes = [1, 32], strides = [1, 1]} : vector<32x32xf32> to vector<1x32xf32>
    %c1_62 = arith.constant 1 : index
    %c320_63 = arith.constant 320 : index
    %101 = vector.load %arg7[%c1_62, %c320_63] : memref<4x1024xf32, #tpu.memory_space<vmem>>, vector<1x32xf32>
    tpu.vector_store %arg7[%c1_62, %c320_63], %100 {strides = array<i32>} : memref<4x1024xf32, #tpu.memory_space<vmem>>, vector<1x32xf32>,
    %102 = vector.extract_strided_slice %79 {offsets = [11, 0], sizes = [1, 32], strides = [1, 1]} : vector<32x32xf32> to vector<1x32xf32>
    %c1_64 = arith.constant 1 : index
    %c352_65 = arith.constant 352 : index
    %103 = vector.load %arg7[%c1_64, %c352_65] : memref<4x1024xf32, #tpu.memory_space<vmem>>, vector<1x32xf32>
    tpu.vector_store %arg7[%c1_64, %c352_65], %102 {strides = array<i32>} : memref<4x1024xf32, #tpu.memory_space<vmem>>, vector<1x32xf32>,
    %104 = vector.extract_strided_slice %79 {offsets = [12, 0], sizes = [1, 32], strides = [1, 1]} : vector<32x32xf32> to vector<1x32xf32>
    %c1_66 = arith.constant 1 : index
    %c384_67 = arith.constant 384 : index
    %105 = vector.load %arg7[%c1_66, %c384_67] : memref<4x1024xf32, #tpu.memory_space<vmem>>, vector<1x32xf32>
    tpu.vector_store %arg7[%c1_66, %c384_67], %104 {strides = array<i32>} : memref<4x1024xf32, #tpu.memory_space<vmem>>, vector<1x32xf32>,
    %106 = vector.extract_strided_slice %79 {offsets = [13, 0], sizes = [1, 32], strides = [1, 1]} : vector<32x32xf32> to vector<1x32xf32>
    %c1_68 = arith.constant 1 : index
    %c416_69 = arith.constant 416 : index
    %107 = vector.load %arg7[%c1_68, %c416_69] : memref<4x1024xf32, #tpu.memory_space<vmem>>, vector<1x32xf32>
    tpu.vector_store %arg7[%c1_68, %c416_69], %106 {strides = array<i32>} : memref<4x1024xf32, #tpu.memory_space<vmem>>, vector<1x32xf32>,
    %108 = vector.extract_strided_slice %79 {offsets = [14, 0], sizes = [1, 32], strides = [1, 1]} : vector<32x32xf32> to vector<1x32xf32>
    %c1_70 = arith.constant 1 : index
    %c448_71 = arith.constant 448 : index
    %109 = vector.load %arg7[%c1_70, %c448_71] : memref<4x1024xf32, #tpu.memory_space<vmem>>, vector<1x32xf32>
    tpu.vector_store %arg7[%c1_70, %c448_71], %108 {strides = array<i32>} : memref<4x1024xf32, #tpu.memory_space<vmem>>, vector<1x32xf32>,
    %110 = vector.extract_strided_slice %79 {offsets = [15, 0], sizes = [1, 32], strides = [1, 1]} : vector<32x32xf32> to vector<1x32xf32>
    %c1_72 = arith.constant 1 : index
    %c480_73 = arith.constant 480 : index
    %111 = vector.load %arg7[%c1_72, %c480_73] : memref<4x1024xf32, #tpu.memory_space<vmem>>, vector<1x32xf32>
    tpu.vector_store %arg7[%c1_72, %c480_73], %110 {strides = array<i32>} : memref<4x1024xf32, #tpu.memory_space<vmem>>, vector<1x32xf32>,
    %112 = vector.extract_strided_slice %79 {offsets = [16, 0], sizes = [1, 32], strides = [1, 1]} : vector<32x32xf32> to vector<1x32xf32>
    %c1_74 = arith.constant 1 : index
    %c512_75 = arith.constant 512 : index
    %113 = vector.load %arg7[%c1_74, %c512_75] : memref<4x1024xf32, #tpu.memory_space<vmem>>, vector<1x32xf32>
    tpu.vector_store %arg7[%c1_74, %c512_75], %112 {strides = array<i32>} : memref<4x1024xf32, #tpu.memory_space<vmem>>, vector<1x32xf32>,
    %114 = vector.extract_strided_slice %79 {offsets = [17, 0], sizes = [1, 32], strides = [1, 1]} : vector<32x32xf32> to vector<1x32xf32>
    %c1_76 = arith.constant 1 : index
    %c544_77 = arith.constant 544 : index
    %115 = vector.load %arg7[%c1_76, %c544_77] : memref<4x1024xf32, #tpu.memory_space<vmem>>, vector<1x32xf32>
    tpu.vector_store %arg7[%c1_76, %c544_77], %114 {strides = array<i32>} : memref<4x1024xf32, #tpu.memory_space<vmem>>, vector<1x32xf32>,
    %116 = vector.extract_strided_slice %79 {offsets = [18, 0], sizes = [1, 32], strides = [1, 1]} : vector<32x32xf32> to vector<1x32xf32>
    %c1_78 = arith.constant 1 : index
    %c576_79 = arith.constant 576 : index
    %117 = vector.load %arg7[%c1_78, %c576_79] : memref<4x1024xf32, #tpu.memory_space<vmem>>, vector<1x32xf32>
    tpu.vector_store %arg7[%c1_78, %c576_79], %116 {strides = array<i32>} : memref<4x1024xf32, #tpu.memory_space<vmem>>, vector<1x32xf32>,
    %118 = vector.extract_strided_slice %79 {offsets = [19, 0], sizes = [1, 32], strides = [1, 1]} : vector<32x32xf32> to vector<1x32xf32>
    %c1_80 = arith.constant 1 : index
    %c608_81 = arith.constant 608 : index
    %119 = vector.load %arg7[%c1_80, %c608_81] : memref<4x1024xf32, #tpu.memory_space<vmem>>, vector<1x32xf32>
    tpu.vector_store %arg7[%c1_80, %c608_81], %118 {strides = array<i32>} : memref<4x1024xf32, #tpu.memory_space<vmem>>, vector<1x32xf32>,
    %120 = vector.extract_strided_slice %79 {offsets = [20, 0], sizes = [1, 32], strides = [1, 1]} : vector<32x32xf32> to vector<1x32xf32>
    %c1_82 = arith.constant 1 : index
    %c640_83 = arith.constant 640 : index
    %121 = vector.load %arg7[%c1_82, %c640_83] : memref<4x1024xf32, #tpu.memory_space<vmem>>, vector<1x32xf32>
    tpu.vector_store %arg7[%c1_82, %c640_83], %120 {strides = array<i32>} : memref<4x1024xf32, #tpu.memory_space<vmem>>, vector<1x32xf32>,
    %122 = vector.extract_strided_slice %79 {offsets = [21, 0], sizes = [1, 32], strides = [1, 1]} : vector<32x32xf32> to vector<1x32xf32>
    %c1_84 = arith.constant 1 : index
    %c672_85 = arith.constant 672 : index
    %123 = vector.load %arg7[%c1_84, %c672_85] : memref<4x1024xf32, #tpu.memory_space<vmem>>, vector<1x32xf32>
    tpu.vector_store %arg7[%c1_84, %c672_85], %122 {strides = array<i32>} : memref<4x1024xf32, #tpu.memory_space<vmem>>, vector<1x32xf32>,
    %124 = vector.extract_strided_slice %79 {offsets = [22, 0], sizes = [1, 32], strides = [1, 1]} : vector<32x32xf32> to vector<1x32xf32>
    %c1_86 = arith.constant 1 : index
    %c704_87 = arith.constant 704 : index
    %125 = vector.load %arg7[%c1_86, %c704_87] : memref<4x1024xf32, #tpu.memory_space<vmem>>, vector<1x32xf32>
    tpu.vector_store %arg7[%c1_86, %c704_87], %124 {strides = array<i32>} : memref<4x1024xf32, #tpu.memory_space<vmem>>, vector<1x32xf32>,
    %126 = vector.extract_strided_slice %79 {offsets = [23, 0], sizes = [1, 32], strides = [1, 1]} : vector<32x32xf32> to vector<1x32xf32>
    %c1_88 = arith.constant 1 : index
    %c736_89 = arith.constant 736 : index
    %127 = vector.load %arg7[%c1_88, %c736_89] : memref<4x1024xf32, #tpu.memory_space<vmem>>, vector<1x32xf32>
    tpu.vector_store %arg7[%c1_88, %c736_89], %126 {strides = array<i32>} : memref<4x1024xf32, #tpu.memory_space<vmem>>, vector<1x32xf32>,
    %128 = vector.extract_strided_slice %79 {offsets = [24, 0], sizes = [1, 32], strides = [1, 1]} : vector<32x32xf32> to vector<1x32xf32>
    %c1_90 = arith.constant 1 : index
    %c768_91 = arith.constant 768 : index
    %129 = vector.load %arg7[%c1_90, %c768_91] : memref<4x1024xf32, #tpu.memory_space<vmem>>, vector<1x32xf32>
    tpu.vector_store %arg7[%c1_90, %c768_91], %128 {strides = array<i32>} : memref<4x1024xf32, #tpu.memory_space<vmem>>, vector<1x32xf32>,
    %130 = vector.extract_strided_slice %79 {offsets = [25, 0], sizes = [1, 32], strides = [1, 1]} : vector<32x32xf32> to vector<1x32xf32>
    %c1_92 = arith.constant 1 : index
    %c800_93 = arith.constant 800 : index
    %131 = vector.load %arg7[%c1_92, %c800_93] : memref<4x1024xf32, #tpu.memory_space<vmem>>, vector<1x32xf32>
    tpu.vector_store %arg7[%c1_92, %c800_93], %130 {strides = array<i32>} : memref<4x1024xf32, #tpu.memory_space<vmem>>, vector<1x32xf32>,
    %132 = vector.extract_strided_slice %79 {offsets = [26, 0], sizes = [1, 32], strides = [1, 1]} : vector<32x32xf32> to vector<1x32xf32>
    %c1_94 = arith.constant 1 : index
    %c832_95 = arith.constant 832 : index
    %133 = vector.load %arg7[%c1_94, %c832_95] : memref<4x1024xf32, #tpu.memory_space<vmem>>, vector<1x32xf32>
    tpu.vector_store %arg7[%c1_94, %c832_95], %132 {strides = array<i32>} : memref<4x1024xf32, #tpu.memory_space<vmem>>, vector<1x32xf32>,
    %134 = vector.extract_strided_slice %79 {offsets = [27, 0], sizes = [1, 32], strides = [1, 1]} : vector<32x32xf32> to vector<1x32xf32>
    %c1_96 = arith.constant 1 : index
    %c864_97 = arith.constant 864 : index
    %135 = vector.load %arg7[%c1_96, %c864_97] : memref<4x1024xf32, #tpu.memory_space<vmem>>, vector<1x32xf32>
    tpu.vector_store %arg7[%c1_96, %c864_97], %134 {strides = array<i32>} : memref<4x1024xf32, #tpu.memory_space<vmem>>, vector<1x32xf32>,
    %136 = vector.extract_strided_slice %79 {offsets = [28, 0], sizes = [1, 32], strides = [1, 1]} : vector<32x32xf32> to vector<1x32xf32>
    %c1_98 = arith.constant 1 : index
    %c896_99 = arith.constant 896 : index
    %137 = vector.load %arg7[%c1_98, %c896_99] : memref<4x1024xf32, #tpu.memory_space<vmem>>, vector<1x32xf32>
    tpu.vector_store %arg7[%c1_98, %c896_99], %136 {strides = array<i32>} : memref<4x1024xf32, #tpu.memory_space<vmem>>, vector<1x32xf32>,
    %138 = vector.extract_strided_slice %79 {offsets = [29, 0], sizes = [1, 32], strides = [1, 1]} : vector<32x32xf32> to vector<1x32xf32>
    %c1_100 = arith.constant 1 : index
    %c928_101 = arith.constant 928 : index
    %139 = vector.load %arg7[%c1_100, %c928_101] : memref<4x1024xf32, #tpu.memory_space<vmem>>, vector<1x32xf32>
    tpu.vector_store %arg7[%c1_100, %c928_101], %138 {strides = array<i32>} : memref<4x1024xf32, #tpu.memory_space<vmem>>, vector<1x32xf32>,
    %140 = vector.extract_strided_slice %79 {offsets = [30, 0], sizes = [1, 32], strides = [1, 1]} : vector<32x32xf32> to vector<1x32xf32>
    %c1_102 = arith.constant 1 : index
    %c960_103 = arith.constant 960 : index
    %141 = vector.load %arg7[%c1_102, %c960_103] : memref<4x1024xf32, #tpu.memory_space<vmem>>, vector<1x32xf32>
    tpu.vector_store %arg7[%c1_102, %c960_103], %140 {strides = array<i32>} : memref<4x1024xf32, #tpu.memory_space<vmem>>, vector<1x32xf32>,
    %142 = vector.extract_strided_slice %79 {offsets = [31, 0], sizes = [1, 32], strides = [1, 1]} : vector<32x32xf32> to vector<1x32xf32>
    %c1_104 = arith.constant 1 : index
    %c992_105 = arith.constant 992 : index
    %143 = vector.load %arg7[%c1_104, %c992_105] : memref<4x1024xf32, #tpu.memory_space<vmem>>, vector<1x32xf32>
    tpu.vector_store %arg7[%c1_104, %c992_105], %142 {strides = array<i32>} : memref<4x1024xf32, #tpu.memory_space<vmem>>, vector<1x32xf32>,
    %144 = vector.extract_strided_slice %1 {offsets = [2, 0, 0], sizes = [1, 16, 16], strides = [1, 1, 1]} : vector<4x16x16xf32> to vector<1x16x16xf32>
    %145 = vector.shape_cast %144 : vector<1x16x16xf32> to vector<16x16xf32>
    %146 = arith.truncf %145 : vector<16x16xf32> to vector<16x16xbf16>
    %cst_106 = arith.constant dense<0.000000e+00> : vector<16x32xf32>
    %147 = tpu.matmul %146, %2, %cst_106 {dimension_numbers = #tpu.dot_dimension_numbers<[1], [0], [0], [1], [0, 0, 1, 1], [], []>} : vector<16x16xbf16>, vector<16x32xbf16>, vector<16x32xf32> -> vector<16x32xf32>
    %148 = arith.truncf %147 : vector<16x32xf32> to vector<16x32xbf16>
    %cst_107 = arith.constant dense<0.000000e+00> : vector<32x32xf32>
    %149 = tpu.matmul %3, %148, %cst_107 {dimension_numbers = #tpu.dot_dimension_numbers<[1], [0], [0], [1], [0, 0, 1, 1], [], []>} : vector<32x16xbf16>, vector<16x32xbf16>, vector<32x32xf32> -> vector<32x32xf32>
    %150 = vector.extract_strided_slice %149 {offsets = [0, 0], sizes = [1, 32], strides = [1, 1]} : vector<32x32xf32> to vector<1x32xf32>
    %c2 = arith.constant 2 : index
    %c0_108 = arith.constant 0 : index
    %151 = vector.load %arg7[%c2, %c0_108] : memref<4x1024xf32, #tpu.memory_space<vmem>>, vector<1x32xf32>
    tpu.vector_store %arg7[%c2, %c0_108], %150 {strides = array<i32>} : memref<4x1024xf32, #tpu.memory_space<vmem>>, vector<1x32xf32>,
    %152 = vector.extract_strided_slice %149 {offsets = [1, 0], sizes = [1, 32], strides = [1, 1]} : vector<32x32xf32> to vector<1x32xf32>
    %c2_109 = arith.constant 2 : index
    %c32_110 = arith.constant 32 : index
    %153 = vector.load %arg7[%c2_109, %c32_110] : memref<4x1024xf32, #tpu.memory_space<vmem>>, vector<1x32xf32>
    tpu.vector_store %arg7[%c2_109, %c32_110], %152 {strides = array<i32>} : memref<4x1024xf32, #tpu.memory_space<vmem>>, vector<1x32xf32>,
    %154 = vector.extract_strided_slice %149 {offsets = [2, 0], sizes = [1, 32], strides = [1, 1]} : vector<32x32xf32> to vector<1x32xf32>
    %c2_111 = arith.constant 2 : index
    %c64_112 = arith.constant 64 : index
    %155 = vector.load %arg7[%c2_111, %c64_112] : memref<4x1024xf32, #tpu.memory_space<vmem>>, vector<1x32xf32>
    tpu.vector_store %arg7[%c2_111, %c64_112], %154 {strides = array<i32>} : memref<4x1024xf32, #tpu.memory_space<vmem>>, vector<1x32xf32>,
    %156 = vector.extract_strided_slice %149 {offsets = [3, 0], sizes = [1, 32], strides = [1, 1]} : vector<32x32xf32> to vector<1x32xf32>
    %c2_113 = arith.constant 2 : index
    %c96_114 = arith.constant 96 : index
    %157 = vector.load %arg7[%c2_113, %c96_114] : memref<4x1024xf32, #tpu.memory_space<vmem>>, vector<1x32xf32>
    tpu.vector_store %arg7[%c2_113, %c96_114], %156 {strides = array<i32>} : memref<4x1024xf32, #tpu.memory_space<vmem>>, vector<1x32xf32>,
    %158 = vector.extract_strided_slice %149 {offsets = [4, 0], sizes = [1, 32], strides = [1, 1]} : vector<32x32xf32> to vector<1x32xf32>
    %c2_115 = arith.constant 2 : index
    %c128_116 = arith.constant 128 : index
    %159 = vector.load %arg7[%c2_115, %c128_116] : memref<4x1024xf32, #tpu.memory_space<vmem>>, vector<1x32xf32>
    tpu.vector_store %arg7[%c2_115, %c128_116], %158 {strides = array<i32>} : memref<4x1024xf32, #tpu.memory_space<vmem>>, vector<1x32xf32>,
    %160 = vector.extract_strided_slice %149 {offsets = [5, 0], sizes = [1, 32], strides = [1, 1]} : vector<32x32xf32> to vector<1x32xf32>
    %c2_117 = arith.constant 2 : index
    %c160_118 = arith.constant 160 : index
    %161 = vector.load %arg7[%c2_117, %c160_118] : memref<4x1024xf32, #tpu.memory_space<vmem>>, vector<1x32xf32>
    tpu.vector_store %arg7[%c2_117, %c160_118], %160 {strides = array<i32>} : memref<4x1024xf32, #tpu.memory_space<vmem>>, vector<1x32xf32>,
    %162 = vector.extract_strided_slice %149 {offsets = [6, 0], sizes = [1, 32], strides = [1, 1]} : vector<32x32xf32> to vector<1x32xf32>
    %c2_119 = arith.constant 2 : index
    %c192_120 = arith.constant 192 : index
    %163 = vector.load %arg7[%c2_119, %c192_120] : memref<4x1024xf32, #tpu.memory_space<vmem>>, vector<1x32xf32>
    tpu.vector_store %arg7[%c2_119, %c192_120], %162 {strides = array<i32>} : memref<4x1024xf32, #tpu.memory_space<vmem>>, vector<1x32xf32>,
    %164 = vector.extract_strided_slice %149 {offsets = [7, 0], sizes = [1, 32], strides = [1, 1]} : vector<32x32xf32> to vector<1x32xf32>
    %c2_121 = arith.constant 2 : index
    %c224_122 = arith.constant 224 : index
    %165 = vector.load %arg7[%c2_121, %c224_122] : memref<4x1024xf32, #tpu.memory_space<vmem>>, vector<1x32xf32>
    tpu.vector_store %arg7[%c2_121, %c224_122], %164 {strides = array<i32>} : memref<4x1024xf32, #tpu.memory_space<vmem>>, vector<1x32xf32>,
    %166 = vector.extract_strided_slice %149 {offsets = [8, 0], sizes = [1, 32], strides = [1, 1]} : vector<32x32xf32> to vector<1x32xf32>
    %c2_123 = arith.constant 2 : index
    %c256_124 = arith.constant 256 : index
    %167 = vector.load %arg7[%c2_123, %c256_124] : memref<4x1024xf32, #tpu.memory_space<vmem>>, vector<1x32xf32>
    tpu.vector_store %arg7[%c2_123, %c256_124], %166 {strides = array<i32>} : memref<4x1024xf32, #tpu.memory_space<vmem>>, vector<1x32xf32>,
    %168 = vector.extract_strided_slice %149 {offsets = [9, 0], sizes = [1, 32], strides = [1, 1]} : vector<32x32xf32> to vector<1x32xf32>
    %c2_125 = arith.constant 2 : index
    %c288_126 = arith.constant 288 : index
    %169 = vector.load %arg7[%c2_125, %c288_126] : memref<4x1024xf32, #tpu.memory_space<vmem>>, vector<1x32xf32>
    tpu.vector_store %arg7[%c2_125, %c288_126], %168 {strides = array<i32>} : memref<4x1024xf32, #tpu.memory_space<vmem>>, vector<1x32xf32>,
    %170 = vector.extract_strided_slice %149 {offsets = [10, 0], sizes = [1, 32], strides = [1, 1]} : vector<32x32xf32> to vector<1x32xf32>
    %c2_127 = arith.constant 2 : index
    %c320_128 = arith.constant 320 : index
    %171 = vector.load %arg7[%c2_127, %c320_128] : memref<4x1024xf32, #tpu.memory_space<vmem>>, vector<1x32xf32>
    tpu.vector_store %arg7[%c2_127, %c320_128], %170 {strides = array<i32>} : memref<4x1024xf32, #tpu.memory_space<vmem>>, vector<1x32xf32>,
    %172 = vector.extract_strided_slice %149 {offsets = [11, 0], sizes = [1, 32], strides = [1, 1]} : vector<32x32xf32> to vector<1x32xf32>
    %c2_129 = arith.constant 2 : index
    %c352_130 = arith.constant 352 : index
    %173 = vector.load %arg7[%c2_129, %c352_130] : memref<4x1024xf32, #tpu.memory_space<vmem>>, vector<1x32xf32>
    tpu.vector_store %arg7[%c2_129, %c352_130], %172 {strides = array<i32>} : memref<4x1024xf32, #tpu.memory_space<vmem>>, vector<1x32xf32>,
    %174 = vector.extract_strided_slice %149 {offsets = [12, 0], sizes = [1, 32], strides = [1, 1]} : vector<32x32xf32> to vector<1x32xf32>
    %c2_131 = arith.constant 2 : index
    %c384_132 = arith.constant 384 : index
    %175 = vector.load %arg7[%c2_131, %c384_132] : memref<4x1024xf32, #tpu.memory_space<vmem>>, vector<1x32xf32>
    tpu.vector_store %arg7[%c2_131, %c384_132], %174 {strides = array<i32>} : memref<4x1024xf32, #tpu.memory_space<vmem>>, vector<1x32xf32>,
    %176 = vector.extract_strided_slice %149 {offsets = [13, 0], sizes = [1, 32], strides = [1, 1]} : vector<32x32xf32> to vector<1x32xf32>
    %c2_133 = arith.constant 2 : index
    %c416_134 = arith.constant 416 : index
    %177 = vector.load %arg7[%c2_133, %c416_134] : memref<4x1024xf32, #tpu.memory_space<vmem>>, vector<1x32xf32>
    tpu.vector_store %arg7[%c2_133, %c416_134], %176 {strides = array<i32>} : memref<4x1024xf32, #tpu.memory_space<vmem>>, vector<1x32xf32>,
    %178 = vector.extract_strided_slice %149 {offsets = [14, 0], sizes = [1, 32], strides = [1, 1]} : vector<32x32xf32> to vector<1x32xf32>
    %c2_135 = arith.constant 2 : index
    %c448_136 = arith.constant 448 : index
    %179 = vector.load %arg7[%c2_135, %c448_136] : memref<4x1024xf32, #tpu.memory_space<vmem>>, vector<1x32xf32>
    tpu.vector_store %arg7[%c2_135, %c448_136], %178 {strides = array<i32>} : memref<4x1024xf32, #tpu.memory_space<vmem>>, vector<1x32xf32>,
    %180 = vector.extract_strided_slice %149 {offsets = [15, 0], sizes = [1, 32], strides = [1, 1]} : vector<32x32xf32> to vector<1x32xf32>
    %c2_137 = arith.constant 2 : index
    %c480_138 = arith.constant 480 : index
    %181 = vector.load %arg7[%c2_137, %c480_138] : memref<4x1024xf32, #tpu.memory_space<vmem>>, vector<1x32xf32>
    tpu.vector_store %arg7[%c2_137, %c480_138], %180 {strides = array<i32>} : memref<4x1024xf32, #tpu.memory_space<vmem>>, vector<1x32xf32>,
    %182 = vector.extract_strided_slice %149 {offsets = [16, 0], sizes = [1, 32], strides = [1, 1]} : vector<32x32xf32> to vector<1x32xf32>
    %c2_139 = arith.constant 2 : index
    %c512_140 = arith.constant 512 : index
    %183 = vector.load %arg7[%c2_139, %c512_140] : memref<4x1024xf32, #tpu.memory_space<vmem>>, vector<1x32xf32>
    tpu.vector_store %arg7[%c2_139, %c512_140], %182 {strides = array<i32>} : memref<4x1024xf32, #tpu.memory_space<vmem>>, vector<1x32xf32>,
    %184 = vector.extract_strided_slice %149 {offsets = [17, 0], sizes = [1, 32], strides = [1, 1]} : vector<32x32xf32> to vector<1x32xf32>
    %c2_141 = arith.constant 2 : index
    %c544_142 = arith.constant 544 : index
    %185 = vector.load %arg7[%c2_141, %c544_142] : memref<4x1024xf32, #tpu.memory_space<vmem>>, vector<1x32xf32>
    tpu.vector_store %arg7[%c2_141, %c544_142], %184 {strides = array<i32>} : memref<4x1024xf32, #tpu.memory_space<vmem>>, vector<1x32xf32>,
    %186 = vector.extract_strided_slice %149 {offsets = [18, 0], sizes = [1, 32], strides = [1, 1]} : vector<32x32xf32> to vector<1x32xf32>
    %c2_143 = arith.constant 2 : index
    %c576_144 = arith.constant 576 : index
    %187 = vector.load %arg7[%c2_143, %c576_144] : memref<4x1024xf32, #tpu.memory_space<vmem>>, vector<1x32xf32>
    tpu.vector_store %arg7[%c2_143, %c576_144], %186 {strides = array<i32>} : memref<4x1024xf32, #tpu.memory_space<vmem>>, vector<1x32xf32>,
    %188 = vector.extract_strided_slice %149 {offsets = [19, 0], sizes = [1, 32], strides = [1, 1]} : vector<32x32xf32> to vector<1x32xf32>
    %c2_145 = arith.constant 2 : index
    %c608_146 = arith.constant 608 : index
    %189 = vector.load %arg7[%c2_145, %c608_146] : memref<4x1024xf32, #tpu.memory_space<vmem>>, vector<1x32xf32>
    tpu.vector_store %arg7[%c2_145, %c608_146], %188 {strides = array<i32>} : memref<4x1024xf32, #tpu.memory_space<vmem>>, vector<1x32xf32>,
    %190 = vector.extract_strided_slice %149 {offsets = [20, 0], sizes = [1, 32], strides = [1, 1]} : vector<32x32xf32> to vector<1x32xf32>
    %c2_147 = arith.constant 2 : index
    %c640_148 = arith.constant 640 : index
    %191 = vector.load %arg7[%c2_147, %c640_148] : memref<4x1024xf32, #tpu.memory_space<vmem>>, vector<1x32xf32>
    tpu.vector_store %arg7[%c2_147, %c640_148], %190 {strides = array<i32>} : memref<4x1024xf32, #tpu.memory_space<vmem>>, vector<1x32xf32>,
    %192 = vector.extract_strided_slice %149 {offsets = [21, 0], sizes = [1, 32], strides = [1, 1]} : vector<32x32xf32> to vector<1x32xf32>
    %c2_149 = arith.constant 2 : index
    %c672_150 = arith.constant 672 : index
    %193 = vector.load %arg7[%c2_149, %c672_150] : memref<4x1024xf32, #tpu.memory_space<vmem>>, vector<1x32xf32>
    tpu.vector_store %arg7[%c2_149, %c672_150], %192 {strides = array<i32>} : memref<4x1024xf32, #tpu.memory_space<vmem>>, vector<1x32xf32>,
    %194 = vector.extract_strided_slice %149 {offsets = [22, 0], sizes = [1, 32], strides = [1, 1]} : vector<32x32xf32> to vector<1x32xf32>
    %c2_151 = arith.constant 2 : index
    %c704_152 = arith.constant 704 : index
    %195 = vector.load %arg7[%c2_151, %c704_152] : memref<4x1024xf32, #tpu.memory_space<vmem>>, vector<1x32xf32>
    tpu.vector_store %arg7[%c2_151, %c704_152], %194 {strides = array<i32>} : memref<4x1024xf32, #tpu.memory_space<vmem>>, vector<1x32xf32>,
    %196 = vector.extract_strided_slice %149 {offsets = [23, 0], sizes = [1, 32], strides = [1, 1]} : vector<32x32xf32> to vector<1x32xf32>
    %c2_153 = arith.constant 2 : index
    %c736_154 = arith.constant 736 : index
    %197 = vector.load %arg7[%c2_153, %c736_154] : memref<4x1024xf32, #tpu.memory_space<vmem>>, vector<1x32xf32>
    tpu.vector_store %arg7[%c2_153, %c736_154], %196 {strides = array<i32>} : memref<4x1024xf32, #tpu.memory_space<vmem>>, vector<1x32xf32>,
    %198 = vector.extract_strided_slice %149 {offsets = [24, 0], sizes = [1, 32], strides = [1, 1]} : vector<32x32xf32> to vector<1x32xf32>
    %c2_155 = arith.constant 2 : index
    %c768_156 = arith.constant 768 : index
    %199 = vector.load %arg7[%c2_155, %c768_156] : memref<4x1024xf32, #tpu.memory_space<vmem>>, vector<1x32xf32>
    tpu.vector_store %arg7[%c2_155, %c768_156], %198 {strides = array<i32>} : memref<4x1024xf32, #tpu.memory_space<vmem>>, vector<1x32xf32>,
    %200 = vector.extract_strided_slice %149 {offsets = [25, 0], sizes = [1, 32], strides = [1, 1]} : vector<32x32xf32> to vector<1x32xf32>
    %c2_157 = arith.constant 2 : index
    %c800_158 = arith.constant 800 : index
    %201 = vector.load %arg7[%c2_157, %c800_158] : memref<4x1024xf32, #tpu.memory_space<vmem>>, vector<1x32xf32>
    tpu.vector_store %arg7[%c2_157, %c800_158], %200 {strides = array<i32>} : memref<4x1024xf32, #tpu.memory_space<vmem>>, vector<1x32xf32>,
    %202 = vector.extract_strided_slice %149 {offsets = [26, 0], sizes = [1, 32], strides = [1, 1]} : vector<32x32xf32> to vector<1x32xf32>
    %c2_159 = arith.constant 2 : index
    %c832_160 = arith.constant 832 : index
    %203 = vector.load %arg7[%c2_159, %c832_160] : memref<4x1024xf32, #tpu.memory_space<vmem>>, vector<1x32xf32>
    tpu.vector_store %arg7[%c2_159, %c832_160], %202 {strides = array<i32>} : memref<4x1024xf32, #tpu.memory_space<vmem>>, vector<1x32xf32>,
    %204 = vector.extract_strided_slice %149 {offsets = [27, 0], sizes = [1, 32], strides = [1, 1]} : vector<32x32xf32> to vector<1x32xf32>
    %c2_161 = arith.constant 2 : index
    %c864_162 = arith.constant 864 : index
    %205 = vector.load %arg7[%c2_161, %c864_162] : memref<4x1024xf32, #tpu.memory_space<vmem>>, vector<1x32xf32>
    tpu.vector_store %arg7[%c2_161, %c864_162], %204 {strides = array<i32>} : memref<4x1024xf32, #tpu.memory_space<vmem>>, vector<1x32xf32>,
    %206 = vector.extract_strided_slice %149 {offsets = [28, 0], sizes = [1, 32], strides = [1, 1]} : vector<32x32xf32> to vector<1x32xf32>
    %c2_163 = arith.constant 2 : index
    %c896_164 = arith.constant 896 : index
    %207 = vector.load %arg7[%c2_163, %c896_164] : memref<4x1024xf32, #tpu.memory_space<vmem>>, vector<1x32xf32>
    tpu.vector_store %arg7[%c2_163, %c896_164], %206 {strides = array<i32>} : memref<4x1024xf32, #tpu.memory_space<vmem>>, vector<1x32xf32>,
    %208 = vector.extract_strided_slice %149 {offsets = [29, 0], sizes = [1, 32], strides = [1, 1]} : vector<32x32xf32> to vector<1x32xf32>
    %c2_165 = arith.constant 2 : index
    %c928_166 = arith.constant 928 : index
    %209 = vector.load %arg7[%c2_165, %c928_166] : memref<4x1024xf32, #tpu.memory_space<vmem>>, vector<1x32xf32>
    tpu.vector_store %arg7[%c2_165, %c928_166], %208 {strides = array<i32>} : memref<4x1024xf32, #tpu.memory_space<vmem>>, vector<1x32xf32>,
    %210 = vector.extract_strided_slice %149 {offsets = [30, 0], sizes = [1, 32], strides = [1, 1]} : vector<32x32xf32> to vector<1x32xf32>
    %c2_167 = arith.constant 2 : index
    %c960_168 = arith.constant 960 : index
    %211 = vector.load %arg7[%c2_167, %c960_168] : memref<4x1024xf32, #tpu.memory_space<vmem>>, vector<1x32xf32>
    tpu.vector_store %arg7[%c2_167, %c960_168], %210 {strides = array<i32>} : memref<4x1024xf32, #tpu.memory_space<vmem>>, vector<1x32xf32>,
    %212 = vector.extract_strided_slice %149 {offsets = [31, 0], sizes = [1, 32], strides = [1, 1]} : vector<32x32xf32> to vector<1x32xf32>
    %c2_169 = arith.constant 2 : index
    %c992_170 = arith.constant 992 : index
    %213 = vector.load %arg7[%c2_169, %c992_170] : memref<4x1024xf32, #tpu.memory_space<vmem>>, vector<1x32xf32>
    tpu.vector_store %arg7[%c2_169, %c992_170], %212 {strides = array<i32>} : memref<4x1024xf32, #tpu.memory_space<vmem>>, vector<1x32xf32>,
    %214 = vector.extract_strided_slice %1 {offsets = [3, 0, 0], sizes = [1, 16, 16], strides = [1, 1, 1]} : vector<4x16x16xf32> to vector<1x16x16xf32>
    %215 = vector.shape_cast %214 : vector<1x16x16xf32> to vector<16x16xf32>
    %216 = arith.truncf %215 : vector<16x16xf32> to vector<16x16xbf16>
    %cst_171 = arith.constant dense<0.000000e+00> : vector<16x32xf32>
    %217 = tpu.matmul %216, %2, %cst_171 {dimension_numbers = #tpu.dot_dimension_numbers<[1], [0], [0], [1], [0, 0, 1, 1], [], []>} : vector<16x16xbf16>, vector<16x32xbf16>, vector<16x32xf32> -> vector<16x32xf32>
    %218 = arith.truncf %217 : vector<16x32xf32> to vector<16x32xbf16>
    %cst_172 = arith.constant dense<0.000000e+00> : vector<32x32xf32>
    %219 = tpu.matmul %3, %218, %cst_172 {dimension_numbers = #tpu.dot_dimension_numbers<[1], [0], [0], [1], [0, 0, 1, 1], [], []>} : vector<32x16xbf16>, vector<16x32xbf16>, vector<32x32xf32> -> vector<32x32xf32>
    %220 = vector.extract_strided_slice %219 {offsets = [0, 0], sizes = [1, 32], strides = [1, 1]} : vector<32x32xf32> to vector<1x32xf32>
    %c3 = arith.constant 3 : index
    %c0_173 = arith.constant 0 : index
    %221 = vector.load %arg7[%c3, %c0_173] : memref<4x1024xf32, #tpu.memory_space<vmem>>, vector<1x32xf32>
    tpu.vector_store %arg7[%c3, %c0_173], %220 {strides = array<i32>} : memref<4x1024xf32, #tpu.memory_space<vmem>>, vector<1x32xf32>,
    %222 = vector.extract_strided_slice %219 {offsets = [1, 0], sizes = [1, 32], strides = [1, 1]} : vector<32x32xf32> to vector<1x32xf32>
    %c3_174 = arith.constant 3 : index
    %c32_175 = arith.constant 32 : index
    %223 = vector.load %arg7[%c3_174, %c32_175] : memref<4x1024xf32, #tpu.memory_space<vmem>>, vector<1x32xf32>
    tpu.vector_store %arg7[%c3_174, %c32_175], %222 {strides = array<i32>} : memref<4x1024xf32, #tpu.memory_space<vmem>>, vector<1x32xf32>,
    %224 = vector.extract_strided_slice %219 {offsets = [2, 0], sizes = [1, 32], strides = [1, 1]} : vector<32x32xf32> to vector<1x32xf32>
    %c3_176 = arith.constant 3 : index
    %c64_177 = arith.constant 64 : index
    %225 = vector.load %arg7[%c3_176, %c64_177] : memref<4x1024xf32, #tpu.memory_space<vmem>>, vector<1x32xf32>
    tpu.vector_store %arg7[%c3_176, %c64_177], %224 {strides = array<i32>} : memref<4x1024xf32, #tpu.memory_space<vmem>>, vector<1x32xf32>,
    %226 = vector.extract_strided_slice %219 {offsets = [3, 0], sizes = [1, 32], strides = [1, 1]} : vector<32x32xf32> to vector<1x32xf32>
    %c3_178 = arith.constant 3 : index
    %c96_179 = arith.constant 96 : index
    %227 = vector.load %arg7[%c3_178, %c96_179] : memref<4x1024xf32, #tpu.memory_space<vmem>>, vector<1x32xf32>
    tpu.vector_store %arg7[%c3_178, %c96_179], %226 {strides = array<i32>} : memref<4x1024xf32, #tpu.memory_space<vmem>>, vector<1x32xf32>,
    %228 = vector.extract_strided_slice %219 {offsets = [4, 0], sizes = [1, 32], strides = [1, 1]} : vector<32x32xf32> to vector<1x32xf32>
    %c3_180 = arith.constant 3 : index
    %c128_181 = arith.constant 128 : index
    %229 = vector.load %arg7[%c3_180, %c128_181] : memref<4x1024xf32, #tpu.memory_space<vmem>>, vector<1x32xf32>
    tpu.vector_store %arg7[%c3_180, %c128_181], %228 {strides = array<i32>} : memref<4x1024xf32, #tpu.memory_space<vmem>>, vector<1x32xf32>,
    %230 = vector.extract_strided_slice %219 {offsets = [5, 0], sizes = [1, 32], strides = [1, 1]} : vector<32x32xf32> to vector<1x32xf32>
    %c3_182 = arith.constant 3 : index
    %c160_183 = arith.constant 160 : index
    %231 = vector.load %arg7[%c3_182, %c160_183] : memref<4x1024xf32, #tpu.memory_space<vmem>>, vector<1x32xf32>
    tpu.vector_store %arg7[%c3_182, %c160_183], %230 {strides = array<i32>} : memref<4x1024xf32, #tpu.memory_space<vmem>>, vector<1x32xf32>,
    %232 = vector.extract_strided_slice %219 {offsets = [6, 0], sizes = [1, 32], strides = [1, 1]} : vector<32x32xf32> to vector<1x32xf32>
    %c3_184 = arith.constant 3 : index
    %c192_185 = arith.constant 192 : index
    %233 = vector.load %arg7[%c3_184, %c192_185] : memref<4x1024xf32, #tpu.memory_space<vmem>>, vector<1x32xf32>
    tpu.vector_store %arg7[%c3_184, %c192_185], %232 {strides = array<i32>} : memref<4x1024xf32, #tpu.memory_space<vmem>>, vector<1x32xf32>,
    %234 = vector.extract_strided_slice %219 {offsets = [7, 0], sizes = [1, 32], strides = [1, 1]} : vector<32x32xf32> to vector<1x32xf32>
    %c3_186 = arith.constant 3 : index
    %c224_187 = arith.constant 224 : index
    %235 = vector.load %arg7[%c3_186, %c224_187] : memref<4x1024xf32, #tpu.memory_space<vmem>>, vector<1x32xf32>
    tpu.vector_store %arg7[%c3_186, %c224_187], %234 {strides = array<i32>} : memref<4x1024xf32, #tpu.memory_space<vmem>>, vector<1x32xf32>,
    %236 = vector.extract_strided_slice %219 {offsets = [8, 0], sizes = [1, 32], strides = [1, 1]} : vector<32x32xf32> to vector<1x32xf32>
    %c3_188 = arith.constant 3 : index
    %c256_189 = arith.constant 256 : index
    %237 = vector.load %arg7[%c3_188, %c256_189] : memref<4x1024xf32, #tpu.memory_space<vmem>>, vector<1x32xf32>
    tpu.vector_store %arg7[%c3_188, %c256_189], %236 {strides = array<i32>} : memref<4x1024xf32, #tpu.memory_space<vmem>>, vector<1x32xf32>,
    %238 = vector.extract_strided_slice %219 {offsets = [9, 0], sizes = [1, 32], strides = [1, 1]} : vector<32x32xf32> to vector<1x32xf32>
    %c3_190 = arith.constant 3 : index
    %c288_191 = arith.constant 288 : index
    %239 = vector.load %arg7[%c3_190, %c288_191] : memref<4x1024xf32, #tpu.memory_space<vmem>>, vector<1x32xf32>
    tpu.vector_store %arg7[%c3_190, %c288_191], %238 {strides = array<i32>} : memref<4x1024xf32, #tpu.memory_space<vmem>>, vector<1x32xf32>,
    %240 = vector.extract_strided_slice %219 {offsets = [10, 0], sizes = [1, 32], strides = [1, 1]} : vector<32x32xf32> to vector<1x32xf32>
    %c3_192 = arith.constant 3 : index
    %c320_193 = arith.constant 320 : index
    %241 = vector.load %arg7[%c3_192, %c320_193] : memref<4x1024xf32, #tpu.memory_space<vmem>>, vector<1x32xf32>
    tpu.vector_store %arg7[%c3_192, %c320_193], %240 {strides = array<i32>} : memref<4x1024xf32, #tpu.memory_space<vmem>>, vector<1x32xf32>,
    %242 = vector.extract_strided_slice %219 {offsets = [11, 0], sizes = [1, 32], strides = [1, 1]} : vector<32x32xf32> to vector<1x32xf32>
    %c3_194 = arith.constant 3 : index
    %c352_195 = arith.constant 352 : index
    %243 = vector.load %arg7[%c3_194, %c352_195] : memref<4x1024xf32, #tpu.memory_space<vmem>>, vector<1x32xf32>
    tpu.vector_store %arg7[%c3_194, %c352_195], %242 {strides = array<i32>} : memref<4x1024xf32, #tpu.memory_space<vmem>>, vector<1x32xf32>,
    %244 = vector.extract_strided_slice %219 {offsets = [12, 0], sizes = [1, 32], strides = [1, 1]} : vector<32x32xf32> to vector<1x32xf32>
    %c3_196 = arith.constant 3 : index
    %c384_197 = arith.constant 384 : index
    %245 = vector.load %arg7[%c3_196, %c384_197] : memref<4x1024xf32, #tpu.memory_space<vmem>>, vector<1x32xf32>
    tpu.vector_store %arg7[%c3_196, %c384_197], %244 {strides = array<i32>} : memref<4x1024xf32, #tpu.memory_space<vmem>>, vector<1x32xf32>,
    %246 = vector.extract_strided_slice %219 {offsets = [13, 0], sizes = [1, 32], strides = [1, 1]} : vector<32x32xf32> to vector<1x32xf32>
    %c3_198 = arith.constant 3 : index
    %c416_199 = arith.constant 416 : index
    %247 = vector.load %arg7[%c3_198, %c416_199] : memref<4x1024xf32, #tpu.memory_space<vmem>>, vector<1x32xf32>
    tpu.vector_store %arg7[%c3_198, %c416_199], %246 {strides = array<i32>} : memref<4x1024xf32, #tpu.memory_space<vmem>>, vector<1x32xf32>,
    %248 = vector.extract_strided_slice %219 {offsets = [14, 0], sizes = [1, 32], strides = [1, 1]} : vector<32x32xf32> to vector<1x32xf32>
    %c3_200 = arith.constant 3 : index
    %c448_201 = arith.constant 448 : index
    %249 = vector.load %arg7[%c3_200, %c448_201] : memref<4x1024xf32, #tpu.memory_space<vmem>>, vector<1x32xf32>
    tpu.vector_store %arg7[%c3_200, %c448_201], %248 {strides = array<i32>} : memref<4x1024xf32, #tpu.memory_space<vmem>>, vector<1x32xf32>,
    %250 = vector.extract_strided_slice %219 {offsets = [15, 0], sizes = [1, 32], strides = [1, 1]} : vector<32x32xf32> to vector<1x32xf32>
    %c3_202 = arith.constant 3 : index
    %c480_203 = arith.constant 480 : index
    %251 = vector.load %arg7[%c3_202, %c480_203] : memref<4x1024xf32, #tpu.memory_space<vmem>>, vector<1x32xf32>
    tpu.vector_store %arg7[%c3_202, %c480_203], %250 {strides = array<i32>} : memref<4x1024xf32, #tpu.memory_space<vmem>>, vector<1x32xf32>,
    %252 = vector.extract_strided_slice %219 {offsets = [16, 0], sizes = [1, 32], strides = [1, 1]} : vector<32x32xf32> to vector<1x32xf32>
    %c3_204 = arith.constant 3 : index
    %c512_205 = arith.constant 512 : index
    %253 = vector.load %arg7[%c3_204, %c512_205] : memref<4x1024xf32, #tpu.memory_space<vmem>>, vector<1x32xf32>
    tpu.vector_store %arg7[%c3_204, %c512_205], %252 {strides = array<i32>} : memref<4x1024xf32, #tpu.memory_space<vmem>>, vector<1x32xf32>,
    %254 = vector.extract_strided_slice %219 {offsets = [17, 0], sizes = [1, 32], strides = [1, 1]} : vector<32x32xf32> to vector<1x32xf32>
    %c3_206 = arith.constant 3 : index
    %c544_207 = arith.constant 544 : index
    %255 = vector.load %arg7[%c3_206, %c544_207] : memref<4x1024xf32, #tpu.memory_space<vmem>>, vector<1x32xf32>
    tpu.vector_store %arg7[%c3_206, %c544_207], %254 {strides = array<i32>} : memref<4x1024xf32, #tpu.memory_space<vmem>>, vector<1x32xf32>,
    %256 = vector.extract_strided_slice %219 {offsets = [18, 0], sizes = [1, 32], strides = [1, 1]} : vector<32x32xf32> to vector<1x32xf32>
    %c3_208 = arith.constant 3 : index
    %c576_209 = arith.constant 576 : index
    %257 = vector.load %arg7[%c3_208, %c576_209] : memref<4x1024xf32, #tpu.memory_space<vmem>>, vector<1x32xf32>
    tpu.vector_store %arg7[%c3_208, %c576_209], %256 {strides = array<i32>} : memref<4x1024xf32, #tpu.memory_space<vmem>>, vector<1x32xf32>,
    %258 = vector.extract_strided_slice %219 {offsets = [19, 0], sizes = [1, 32], strides = [1, 1]} : vector<32x32xf32> to vector<1x32xf32>
    %c3_210 = arith.constant 3 : index
    %c608_211 = arith.constant 608 : index
    %259 = vector.load %arg7[%c3_210, %c608_211] : memref<4x1024xf32, #tpu.memory_space<vmem>>, vector<1x32xf32>
    tpu.vector_store %arg7[%c3_210, %c608_211], %258 {strides = array<i32>} : memref<4x1024xf32, #tpu.memory_space<vmem>>, vector<1x32xf32>,
    %260 = vector.extract_strided_slice %219 {offsets = [20, 0], sizes = [1, 32], strides = [1, 1]} : vector<32x32xf32> to vector<1x32xf32>
    %c3_212 = arith.constant 3 : index
    %c640_213 = arith.constant 640 : index
    %261 = vector.load %arg7[%c3_212, %c640_213] : memref<4x1024xf32, #tpu.memory_space<vmem>>, vector<1x32xf32>
    tpu.vector_store %arg7[%c3_212, %c640_213], %260 {strides = array<i32>} : memref<4x1024xf32, #tpu.memory_space<vmem>>, vector<1x32xf32>,
    %262 = vector.extract_strided_slice %219 {offsets = [21, 0], sizes = [1, 32], strides = [1, 1]} : vector<32x32xf32> to vector<1x32xf32>
    %c3_214 = arith.constant 3 : index
    %c672_215 = arith.constant 672 : index
    %263 = vector.load %arg7[%c3_214, %c672_215] : memref<4x1024xf32, #tpu.memory_space<vmem>>, vector<1x32xf32>
    tpu.vector_store %arg7[%c3_214, %c672_215], %262 {strides = array<i32>} : memref<4x1024xf32, #tpu.memory_space<vmem>>, vector<1x32xf32>,
    %264 = vector.extract_strided_slice %219 {offsets = [22, 0], sizes = [1, 32], strides = [1, 1]} : vector<32x32xf32> to vector<1x32xf32>
    %c3_216 = arith.constant 3 : index
    %c704_217 = arith.constant 704 : index
    %265 = vector.load %arg7[%c3_216, %c704_217] : memref<4x1024xf32, #tpu.memory_space<vmem>>, vector<1x32xf32>
    tpu.vector_store %arg7[%c3_216, %c704_217], %264 {strides = array<i32>} : memref<4x1024xf32, #tpu.memory_space<vmem>>, vector<1x32xf32>,
    %266 = vector.extract_strided_slice %219 {offsets = [23, 0], sizes = [1, 32], strides = [1, 1]} : vector<32x32xf32> to vector<1x32xf32>
    %c3_218 = arith.constant 3 : index
    %c736_219 = arith.constant 736 : index
    %267 = vector.load %arg7[%c3_218, %c736_219] : memref<4x1024xf32, #tpu.memory_space<vmem>>, vector<1x32xf32>
    tpu.vector_store %arg7[%c3_218, %c736_219], %266 {strides = array<i32>} : memref<4x1024xf32, #tpu.memory_space<vmem>>, vector<1x32xf32>,
    %268 = vector.extract_strided_slice %219 {offsets = [24, 0], sizes = [1, 32], strides = [1, 1]} : vector<32x32xf32> to vector<1x32xf32>
    %c3_220 = arith.constant 3 : index
    %c768_221 = arith.constant 768 : index
    %269 = vector.load %arg7[%c3_220, %c768_221] : memref<4x1024xf32, #tpu.memory_space<vmem>>, vector<1x32xf32>
    tpu.vector_store %arg7[%c3_220, %c768_221], %268 {strides = array<i32>} : memref<4x1024xf32, #tpu.memory_space<vmem>>, vector<1x32xf32>,
    %270 = vector.extract_strided_slice %219 {offsets = [25, 0], sizes = [1, 32], strides = [1, 1]} : vector<32x32xf32> to vector<1x32xf32>
    %c3_222 = arith.constant 3 : index
    %c800_223 = arith.constant 800 : index
    %271 = vector.load %arg7[%c3_222, %c800_223] : memref<4x1024xf32, #tpu.memory_space<vmem>>, vector<1x32xf32>
    tpu.vector_store %arg7[%c3_222, %c800_223], %270 {strides = array<i32>} : memref<4x1024xf32, #tpu.memory_space<vmem>>, vector<1x32xf32>,
    %272 = vector.extract_strided_slice %219 {offsets = [26, 0], sizes = [1, 32], strides = [1, 1]} : vector<32x32xf32> to vector<1x32xf32>
    %c3_224 = arith.constant 3 : index
    %c832_225 = arith.constant 832 : index
    %273 = vector.load %arg7[%c3_224, %c832_225] : memref<4x1024xf32, #tpu.memory_space<vmem>>, vector<1x32xf32>
    tpu.vector_store %arg7[%c3_224, %c832_225], %272 {strides = array<i32>} : memref<4x1024xf32, #tpu.memory_space<vmem>>, vector<1x32xf32>,
    %274 = vector.extract_strided_slice %219 {offsets = [27, 0], sizes = [1, 32], strides = [1, 1]} : vector<32x32xf32> to vector<1x32xf32>
    %c3_226 = arith.constant 3 : index
    %c864_227 = arith.constant 864 : index
    %275 = vector.load %arg7[%c3_226, %c864_227] : memref<4x1024xf32, #tpu.memory_space<vmem>>, vector<1x32xf32>
    tpu.vector_store %arg7[%c3_226, %c864_227], %274 {strides = array<i32>} : memref<4x1024xf32, #tpu.memory_space<vmem>>, vector<1x32xf32>,
    %276 = vector.extract_strided_slice %219 {offsets = [28, 0], sizes = [1, 32], strides = [1, 1]} : vector<32x32xf32> to vector<1x32xf32>
    %c3_228 = arith.constant 3 : index
    %c896_229 = arith.constant 896 : index
    %277 = vector.load %arg7[%c3_228, %c896_229] : memref<4x1024xf32, #tpu.memory_space<vmem>>, vector<1x32xf32>
    tpu.vector_store %arg7[%c3_228, %c896_229], %276 {strides = array<i32>} : memref<4x1024xf32, #tpu.memory_space<vmem>>, vector<1x32xf32>,
    %278 = vector.extract_strided_slice %219 {offsets = [29, 0], sizes = [1, 32], strides = [1, 1]} : vector<32x32xf32> to vector<1x32xf32>
    %c3_230 = arith.constant 3 : index
    %c928_231 = arith.constant 928 : index
    %279 = vector.load %arg7[%c3_230, %c928_231] : memref<4x1024xf32, #tpu.memory_space<vmem>>, vector<1x32xf32>
    tpu.vector_store %arg7[%c3_230, %c928_231], %278 {strides = array<i32>} : memref<4x1024xf32, #tpu.memory_space<vmem>>, vector<1x32xf32>,
    %280 = vector.extract_strided_slice %219 {offsets = [30, 0], sizes = [1, 32], strides = [1, 1]} : vector<32x32xf32> to vector<1x32xf32>
    %c3_232 = arith.constant 3 : index
    %c960_233 = arith.constant 960 : index
    %281 = vector.load %arg7[%c3_232, %c960_233] : memref<4x1024xf32, #tpu.memory_space<vmem>>, vector<1x32xf32>
    tpu.vector_store %arg7[%c3_232, %c960_233], %280 {strides = array<i32>} : memref<4x1024xf32, #tpu.memory_space<vmem>>, vector<1x32xf32>,
    %282 = vector.extract_strided_slice %219 {offsets = [31, 0], sizes = [1, 32], strides = [1, 1]} : vector<32x32xf32> to vector<1x32xf32>
    %c3_234 = arith.constant 3 : index
    %c992_235 = arith.constant 992 : index
    %283 = vector.load %arg7[%c3_234, %c992_235] : memref<4x1024xf32, #tpu.memory_space<vmem>>, vector<1x32xf32>
    tpu.vector_store %arg7[%c3_234, %c992_235], %282 {strides = array<i32>} : memref<4x1024xf32, #tpu.memory_space<vmem>>, vector<1x32xf32>,
    %c0_236 = arith.constant 0 : index
    %c0_237 = arith.constant 0 : index
    %284 = vector.load %arg4[%c0_236, %c0_237] : memref<8x4xbf16, #tpu.memory_space<vmem>>, vector<8x4xbf16>
    %c0_238 = arith.constant 0 : index
    %c0_239 = arith.constant 0 : index
    %285 = vector.load %arg7[%c0_238, %c0_239] : memref<4x1024xf32, #tpu.memory_space<vmem>>, vector<4x1024xf32>
    %286 = arith.truncf %285 : vector<4x1024xf32> to vector<4x1024xbf16>
    %cst_240 = arith.constant dense<0.000000e+00> : vector<8x1024xf32>
    %287 = tpu.matmul %284, %286, %cst_240 {dimension_numbers = #tpu.dot_dimension_numbers<[1], [0], [0], [1], [0, 0, 1, 1], [], []>} : vector<8x4xbf16>, vector<4x1024xbf16>, vector<8x1024xf32> -> vector<8x1024xf32>
    %c0_241 = arith.constant 0 : index
    %c0_242 = arith.constant 0 : index
    %c0_243 = arith.constant 0 : index
    %288 = vector.load %arg5[%c0_241, %c0_242, %c0_243] : memref<1x8x1024xf32, #tpu.memory_space<vmem>>, vector<1x8x1024xf32>
    %289 = vector.shape_cast %288 : vector<1x8x1024xf32> to vector<8x1024xf32>
    %290 = vector.shape_cast %287 : vector<8x1024xf32> to vector<1x8x1024xf32>
    tpu.vector_store %arg5[%c0_241, %c0_242, %c0_243], %290 {strides = array<i32>} : memref<1x8x1024xf32, #tpu.memory_space<vmem>>, vector<1x8x1024xf32>,
    %cst_244 = arith.constant dense<0.000000e+00> : vector<8xf32>
    %291 = vector.multi_reduction <add>, %287, %cst_244 [1] : vector<8x1024xf32> to vector<8xf32>
    %292 = vector.shape_cast %291 : vector<8xf32> to vector<8x1xf32>
    %293 = arith.mulf %287, %287 : vector<8x1024xf32>
    %cst_245 = arith.constant dense<0.000000e+00> : vector<8xf32>
    %294 = vector.multi_reduction <add>, %293, %cst_245 [1] : vector<8x1024xf32> to vector<8xf32>
    %295 = vector.shape_cast %294 : vector<8xf32> to vector<8x1xf32>
    %296 = tpu.concatenate %292, %295 in 1 : vector<8x1xf32>, vector<8x1xf32> -> vector<8x2xf32>
    %c0_246 = arith.constant 0 : index
    %c0_247 = arith.constant 0 : index
    %c0_248 = arith.constant 0 : index
    %297 = vector.load %arg6[%c0_246, %c0_247, %c0_248] : memref<1x8x2xf32, #tpu.memory_space<vmem>>, vector<1x8x2xf32>
    %298 = vector.shape_cast %297 : vector<1x8x2xf32> to vector<8x2xf32>
    %299 = vector.shape_cast %296 : vector<8x2xf32> to vector<1x8x2xf32>
    tpu.vector_store %arg6[%c0_246, %c0_247, %c0_248], %299 {strides = array<i32>} : memref<1x8x2xf32, #tpu.memory_space<vmem>>, vector<1x8x2xf32>,
    return
  }
  func.func @transform_0(%arg0: i32) -> (i32, i32, i32, i32) {
    %c0_i32 = arith.constant 0 : i32
    %c0_i32_0 = arith.constant 0 : i32
    %c0_i32_1 = arith.constant 0 : i32
    %c0_i32_2 = arith.constant 0 : i32
    return %arg0, %c0_i32, %c0_i32_0, %c0_i32_1 : i32, i32, i32, i32
  }
  func.func @transform_1(%arg0: i32) -> (i32, i32) {
    %c0_i32 = arith.constant 0 : i32
    %c0_i32_0 = arith.constant 0 : i32
    %c0_i32_1 = arith.constant 0 : i32
    return %c0_i32, %c0_i32_0 : i32, i32
  }
  func.func @transform_2(%arg0: i32) -> (i32, i32) {
    %c0_i32 = arith.constant 0 : i32
    %c0_i32_0 = arith.constant 0 : i32
    %c0_i32_1 = arith.constant 0 : i32
    return %c0_i32, %c0_i32_0 : i32, i32
  }
  func.func @transform_3(%arg0: i32) -> (i32, i32) {
    %c0_i32 = arith.constant 0 : i32
    %c0_i32_0 = arith.constant 0 : i32
    %c0_i32_1 = arith.constant 0 : i32
    return %c0_i32, %c0_i32_0 : i32, i32
  }
  func.func @transform_4(%arg0: i32) -> (i32, i32, i32) {
    %c0_i32 = arith.constant 0 : i32
    %c0_i32_0 = arith.constant 0 : i32
    %c0_i32_1 = arith.constant 0 : i32
    return %arg0, %c0_i32, %c0_i32_0 : i32, i32, i32
  }
  func.func @transform_5(%arg0: i32) -> (i32, i32, i32) {
    %c0_i32 = arith.constant 0 : i32
    %c0_i32_0 = arith.constant 0 : i32
    %c0_i32_1 = arith.constant 0 : i32
    return %arg0, %c0_i32, %c0_i32_0 : i32, i32, i32
  }
}

</mosaic_0001>

<llo_original>
// kernel: tpu_custom_call.1
$region0: #{tpu_custom_call.1}
  #allocation0 [shape = 'u32[]', space=smem, size = 0x4, offset = 0x4, fixed_abs, tag = 'smem constant byte address 0x4 - core index']
  #allocation1 [shape = 'u32[144,128]{1,0:T(1,128)}', space=vmem, size = 0x12000, scoped, tag = 'internal scratch']
  #allocation2 [shape = 'f32[4,1024]{1,0:T(4,128)}', space=vmem, size = 0x4000, scoped, tag = 'scratch operand']
  %s0 = inlined_call_operand.hbm [shape: f32[2,4,16,16], index: 0, kind: input, shape index: {}]
  %s1 = inlined_call_operand.vmem [shape: bf16[16,32], index: 1, kind: input, shape index: {}]
  %s2 = inlined_call_operand.vmem [shape: bf16[32,16], index: 2, kind: input, shape index: {}]
  %s3 = inlined_call_operand.vmem [shape: bf16[8,4], index: 3, kind: input, shape index: {}]
  %s4 = inlined_call_operand.hbm [shape: f32[2,8,1024], index: 4, kind: output, shape index: {0}]
  %s5 = inlined_call_operand.vmem [shape: f32[2,8,2], index: 5, kind: output, shape index: {1}]
  %6 = xla_tuple %s4, %s5
  %s7 = sld [smem:[#allocation0]]
  $region61: #{tpu_custom_call.1} parent=0
    _
  %s9 = ssub.s32 1, %s7
  %s10 = scalar_select 0, %s9, %s7
  $region1: #{tpu_custom_call.1} parent=0
    #allocation3 [shape = 'u8[65536]{0}', space=vmem, size = 0x10000, scoped, tag = 'input window, operand 0']
    #allocation4 [shape = 's32[2]{0}', space=sflag, size = 0x8, scoped, tag = 'scoped memory for tpu_custom_call.1']
    #allocation5 [shape = 's32[2]{0}', space=sflag, size = 0x8, scoped, tag = 'scoped memory for tpu_custom_call.1']
    #allocation6 [shape = 'u8[65536]{0}', space=vmem, size = 0x10000, scoped, tag = 'output window, operand 0']
    %11 = vsyncpa [#allocation4], 0
    %s12 = scalar_lea.sflag [#allocation4], 1
    %13 = vsyncpa %s12, 0
    %14 = vsyncpa [#allocation5], 0
    %s15 = scalar_lea.sflag [#allocation5], 1
    %16 = vsyncpa %s15, 0
    loop: start=0, step=1, limit=4
    $region2: #{tpu_custom_call.1} parent=1 // loop_pre_header
      _
    $region3: #{tpu_custom_call.1} parent=1 // loop_header
      %s18 = sphi 0, %s22
      %p19 = scmp.ge.s32.totalorder %s18, 4
      %s28 = sphi 0, %s30
      %s31 = sphi 0, %s28
      %s32 = sphi 0, %s31
      %s48 = sphi 0, %s32
      %s52 = sphi 0, %s52
      %s54 = sphi 0, %s52
      %s55 = sphi 0, %s54
      %s69 = sphi 0, %s55
      %s73 = sphi 0, %s73
      %s75 = sphi 0, %s73
      %s76 = sphi 0, %s75
      %s90 = sphi 0, %s76
      %s94 = sphi 0, %s94
      %s96 = sphi 0, %s94
      %s97 = sphi 0, %s96
      %s111 = sphi 0, %s97
      %s117 = sphi 0, %s119
      %s120 = sphi 0, %s117
      %s121 = sphi 0, %s120
      %s137 = sphi 0, %s121
      %s143 = sphi 0, %s145
      %s146 = sphi 0, %s143
      %s147 = sphi 0, %s146
      %s163 = sphi 0, %s147
    $region4: #{tpu_custom_call.1} parent=1 // loop_header_branch
      %21 = sbr.rel (%p19) target = $region8
    $region5: #{tpu_custom_call.1} parent=1 // loop_body
      %s23 = ssub.s32 %s18, 1
      %s24 = ssub.s32 %s18, 2
      %s25 = sadd.s32 %s18, 1
      %s26 = ssub.s32 %s18, %s25
      %p27 = scmp.eq.s32.totalorder %s26, 0
      %s29 = sadd.s32 %s28, 1
      %s30 = scalar_select %p27, %s28, %s29
      %p33 = pneg %p27
      %p34 = scmp.eq.s32.totalorder %s18, 1
      %p35 = por %p33, %p34
      %p36 = scmp.ne.s32.totalorder %s28, %s31
      %p37 = scmp.eq.s32.totalorder %s18, 0
      %p38 = por %p36, %p37
      %p39 = scmp.ne.s32.totalorder %s28, %s31
      %p40 = scmp.eq.s32.totalorder %s23, 1
      %p41 = por %p39, %p40
      %p42 = scmp.ne.s32.totalorder %s31, %s32
      %p43 = scmp.eq.s32.totalorder %s23, 0
      %p44 = por %p42, %p43
      %p45 = scmp.ne.s32.totalorder %s31, %s32
      %p46 = scmp.eq.s32.totalorder %s24, 1
      %p47 = por %p45, %p46
      %p49 = scmp.ne.s32.totalorder %s32, %s48
      %p50 = scmp.eq.s32.totalorder %s24, 0
      %p51 = por %p49, %p50
      %s53 = sadd.s32 %s52, 1
      %p56 = scmp.eq.s32.totalorder %s18, 1
      %p57 = scmp.ne.s32.totalorder %s52, %s54
      %p58 = scmp.eq.s32.totalorder %s18, 0
      %p59 = por %p57, %p58
      %p60 = scmp.ne.s32.totalorder %s52, %s54
      %p61 = scmp.eq.s32.totalorder %s23, 1
      %p62 = por %p60, %p61
      %p63 = scmp.ne.s32.totalorder %s54, %s55
      %p64 = scmp.eq.s32.totalorder %s23, 0
      %p65 = por %p63, %p64
      %p66 = scmp.ne.s32.totalorder %s54, %s55
      %p67 = scmp.eq.s32.totalorder %s24, 1
      %p68 = por %p66, %p67
      %p70 = scmp.ne.s32.totalorder %s55, %s69
      %p71 = scmp.eq.s32.totalorder %s24, 0
      %p72 = por %p70, %p71
      %s74 = sadd.s32 %s73, 1
      %p77 = scmp.eq.s32.totalorder %s18, 1
      %p78 = scmp.ne.s32.totalorder %s73, %s75
      %p79 = scmp.eq.s32.totalorder %s18, 0
      %p80 = por %p78, %p79
      %p81 = scmp.ne.s32.totalorder %s73, %s75
      %p82 = scmp.eq.s32.totalorder %s23, 1
      %p83 = por %p81, %p82
      %p84 = scmp.ne.s32.totalorder %s75, %s76
      %p85 = scmp.eq.s32.totalorder %s23, 0
      %p86 = por %p84, %p85
      %p87 = scmp.ne.s32.totalorder %s75, %s76
      %p88 = scmp.eq.s32.totalorder %s24, 1
      %p89 = por %p87, %p88
      %p91 = scmp.ne.s32.totalorder %s76, %s90
      %p92 = scmp.eq.s32.totalorder %s24, 0
      %p93 = por %p91, %p92
      %s95 = sadd.s32 %s94, 1
      %p98 = scmp.eq.s32.totalorder %s18, 1
      %p99 = scmp.ne.s32.totalorder %s94, %s96
      %p100 = scmp.eq.s32.totalorder %s18, 0
      %p101 = por %p99, %p100
      %p102 = scmp.ne.s32.totalorder %s94, %s96
      %p103 = scmp.eq.s32.totalorder %s23, 1
      %p104 = por %p102, %p103
      %p105 = scmp.ne.s32.totalorder %s96, %s97
      %p106 = scmp.eq.s32.totalorder %s23, 0
      %p107 = por %p105, %p106
      %p108 = scmp.ne.s32.totalorder %s96, %s97
      %p109 = scmp.eq.s32.totalorder %s24, 1
      %p110 = por %p108, %p109
      %p112 = scmp.ne.s32.totalorder %s97, %s111
      %p113 = scmp.eq.s32.totalorder %s24, 0
      %p114 = por %p112, %p113
      %s115 = ssub.s32 %s18, %s25
      %p116 = scmp.eq.s32.totalorder %s115, 0
      %s118 = sadd.s32 %s117, 1
      %s119 = scalar_select %p116, %s117, %s118
      %p122 = pneg %p116
      %p123 = scmp.eq.s32.totalorder %s18, 1
      %p124 = por %p122, %p123
      %p125 = scmp.ne.s32.totalorder %s117, %s120
      %p126 = scmp.eq.s32.totalorder %s18, 0
      %p127 = por %p125, %p126
      %p128 = scmp.ne.s32.totalorder %s117, %s120
      %p129 = scmp.eq.s32.totalorder %s23, 1
      %p130 = por %p128, %p129
      %p131 = scmp.ne.s32.totalorder %s120, %s121
      %p132 = scmp.eq.s32.totalorder %s23, 0
      %p133 = por %p131, %p132
      %p134 = scmp.ne.s32.totalorder %s120, %s121
      %p135 = scmp.eq.s32.totalorder %s24, 1
      %p136 = por %p134, %p135
      %p138 = scmp.ne.s32.totalorder %s121, %s137
      %p139 = scmp.eq.s32.totalorder %s24, 0
      %p140 = por %p138, %p139
      %s141 = ssub.s32 %s18, %s25
      %p142 = scmp.eq.s32.totalorder %s141, 0
      %s144 = sadd.s32 %s143, 1
      %s145 = scalar_select %p142, %s143, %s144
      %p148 = pneg %p142
      %p149 = scmp.eq.s32.totalorder %s18, 1
      %p150 = por %p148, %p149
      %p151 = scmp.ne.s32.totalorder %s143, %s146
      %p152 = scmp.eq.s32.totalorder %s18, 0
      %p153 = por %p151, %p152
      %p154 = scmp.ne.s32.totalorder %s143, %s146
      %p155 = scmp.eq.s32.totalorder %s23, 1
      %p156 = por %p154, %p155
      %p157 = scmp.ne.s32.totalorder %s146, %s147
      %p158 = scmp.eq.s32.totalorder %s23, 0
      %p159 = por %p157, %p158
      %p160 = scmp.ne.s32.totalorder %s146, %s147
      %p161 = scmp.eq.s32.totalorder %s24, 1
      %p162 = por %p160, %p161
      %p164 = scmp.ne.s32.totalorder %s147, %s163
      %p165 = scmp.eq.s32.totalorder %s24, 0
      %p166 = por %p164, %p165
      %p167 = scmp.le.s32.totalorder 1, %s18
      %p168 = scmp.lt.s32.totalorder %s18, 3
      %p169 = pnand %p167, %p168
      %p170 = pneg %p169
      // Predicated region
      $region9: #{tpu_custom_call.1} parent=5 // pred_check
        _
      $region10: #{tpu_custom_call.1} parent=5 // pred_check_branch
        %172 = sbr.rel (%p169) target = $region12
      $region11: #{tpu_custom_call.1} parent=5 // pred_region
        %s173 = ssub.s32 %s18, 1
        // Predicated region
        $region13: #{tpu_custom_call.1} parent=11 // pred_check
          %p174 = pneg %p65
        $region14: #{tpu_custom_call.1} parent=11 // pred_check_branch
          %176 = sbr.rel (%p174) target = $region16
        $region15: #{tpu_custom_call.1} parent=11 // pred_region
          _
        $region16: #{tpu_custom_call.1} parent=11 // pred_fallthru
          _
        // Predicated region
        $region17: #{tpu_custom_call.1} parent=11 // pred_check
          %p177 = pneg %p86
        $region18: #{tpu_custom_call.1} parent=11 // pred_check_branch
          %179 = sbr.rel (%p177) target = $region20
        $region19: #{tpu_custom_call.1} parent=11 // pred_region
          _
        $region20: #{tpu_custom_call.1} parent=11 // pred_fallthru
          _
        // Predicated region
        $region21: #{tpu_custom_call.1} parent=11 // pred_check
          %p180 = pneg %p107
        $region22: #{tpu_custom_call.1} parent=11 // pred_check_branch
          %182 = sbr.rel (%p180) target = $region24
        $region23: #{tpu_custom_call.1} parent=11 // pred_region
          _
        $region24: #{tpu_custom_call.1} parent=11 // pred_fallthru
          _
      $region12: #{tpu_custom_call.1} parent=5 // pred_fallthru
        _
      %p183 = scmp.lt.s32.totalorder %s18, 2
      // Predicated region
      $region25: #{tpu_custom_call.1} parent=5 // pred_check
        %p184 = pneg %p183
      $region26: #{tpu_custom_call.1} parent=5 // pred_check_branch
        %186 = sbr.rel (%p184) target = $region28
      $region27: #{tpu_custom_call.1} parent=5 // pred_region
        // Predicated region
        $region29: #{tpu_custom_call.1} parent=27 // pred_check
          %p187 = pneg %p38
        $region30: #{tpu_custom_call.1} parent=27 // pred_check_branch
          %189 = sbr.rel (%p187) target = $region32
        $region31: #{tpu_custom_call.1} parent=27 // pred_region
          %s190 = sand.u32 %s28, 1
          %s191 = scalar_lea.sflag [#allocation4], %s190
          %s192 = sand.u32 %s28, 1
          %s193 = smul.addr %s192, 64
          %s194 = scalar_lea.vmem [#allocation3], %s193
          %s196 = ssub.s32 1024, 1024
          %197 = vsyncadd %s191, %s196
          %s198 = smul.addr %s18, 8
          %s199 = smul.addr %s198, 128
          %s200 = scalar_lea.hbm %s0, %s199
          %s201 = sshll.u32 %s194, 4
          %s202 = int_to_ptr.vmem [resolvable:$true] %s201
          %207 = dma.hbm_to_vmem [thread:$0]  %s200, 1024, %s202, %s191, 128, 128, 8
        $region32: #{tpu_custom_call.1} parent=27 // pred_fallthru
          _
      $region28: #{tpu_custom_call.1} parent=5 // pred_fallthru
        _
      %p208 = scmp.le.s32.totalorder 1, %s18
      %p209 = scmp.lt.s32.totalorder %s18, 3
      %p210 = pnand %p208, %p209
      %p211 = pneg %p210
      // Predicated region
      $region33: #{tpu_custom_call.1} parent=5 // pred_check
        _
      $region34: #{tpu_custom_call.1} parent=5 // pred_check_branch
        %213 = sbr.rel (%p210) target = $region36
      $region35: #{tpu_custom_call.1} parent=5 // pred_region
        %s214 = ssub.s32 %s18, 1
        %s215 = sand.u32 %s31, 1
        %s216 = scalar_lea.sflag [#allocation4], %s215
        %s217 = sand.u32 %s31, 1
        %s218 = smul.addr %s217, 64
        %s219 = scalar_lea.vmem [#allocation3], %s218
        // Predicated region
        $region37: #{tpu_custom_call.1} parent=35 // pred_check
          %p220 = pneg %p44
        $region38: #{tpu_custom_call.1} parent=35 // pred_check_branch
          %222 = sbr.rel (%p220) target = $region40
        $region39: #{tpu_custom_call.1} parent=35 // pred_region
          %223 = dma.done %s216, 1024
        $region40: #{tpu_custom_call.1} parent=35 // pred_fallthru
          _
        %s224 = sand.u32 %s31, 1
        %s225 = scalar_lea.sflag [#allocation4], %s224
        %s226 = sand.u32 %s31, 1
        %s227 = smul.addr %s226, 64
        %s228 = scalar_lea.vmem [#allocation3], %s227
        %p229 = pneg %p44
        %p230 = pneg %p41
        %p231 = pneg %p65
        %p232 = pneg %p62
        %p233 = pneg %p86
        %p234 = pneg %p83
        %p235 = pneg %p107
        %p236 = pneg %p104
        %p237 = pneg %p133
        %p238 = pneg %p130
        %s239 = sand.u32 %s120, 1
        %s240 = scalar_lea.sflag [#allocation5], %s239
        %s241 = sand.u32 %s120, 1
        %s242 = smul.addr %s241, 64
        %s243 = scalar_lea.vmem [#allocation6], %s242
        %p244 = pneg %p159
        %p245 = pneg %p156
        %p246 = scmp.lt.s32.totalorder %s23, 1
        %s247 = scalar_select %p246, %s23, 1
        %s248 = smul.addr %s247, 8
        %s249 = scalar_lea.vmem %s5, %s248
        %p250 = scmp.lt.s32.totalorder %s23, 1
        %s251 = scalar_select %p250, %s23, 1
        %s252 = smul.addr %s251, 8
        %s253 = scalar_lea.vmem %s5, %s252
        %v255 = vld [vmem:[%s219] sm:$0xff]
        %v256 = vld [vmem:[%s219 + $0x8] sm:$0xff]
        %v257 = vld [vmem:[%s219 + $0x10] sm:$0xff]
        %v258 = vld [vmem:[%s219 + $0x18] sm:$0xff]
        %v259 = vld [vmem:[%s219 + $0x20] sm:$0xff]
        %v260 = vld [vmem:[%s219 + $0x28] sm:$0xff]
        %v261 = vld [vmem:[%s219 + $0x30] sm:$0xff]
        %v262 = vld [vmem:[%s219 + $0x38] sm:$0xff]
        %v263 = vld [vmem:[%s1] sm:$0xf]
        %v264 = vld [vmem:[%s1 + $0x4] sm:$0xf]
        %v265 = vld [vmem:[%s2] sm:$0xf]
        %v266 = vld [vmem:[%s2 + $0x4] sm:$0xf]
        %v267 = vld [vmem:[%s2 + $0x8] sm:$0xf]
        %v268 = vld [vmem:[%s2 + $0xc] sm:$0xf]
        %v269 = vpack.c.bf16 %v256, %v255
        %v272 = vunpack.c.l.b16 %v263
        %v273 = vunpack.c.l.b16 %v264
        %v274 = vpack.c.b16 %v273, %v272
        %vm276 = vcmask 130048
        %v278 = vsel %vm276, %v269, 0
        %280 = vmatprep.subr.bf16.mxu0 0
        %281 = vmatpush1.bf16.msra.mxu0 0
        %282 = vmatprep.subr.bf16.mxu0 0
        %283 = vmatpush1.bf16.msra.mxu0 0
        %284 = vmatprep.subr.bf16.mxu0 0
        %285 = vmatpush1.bf16.msra.mxu0 0
        %286 = vmatprep.subr.bf16.mxu0 0
        %287 = vmatpush1.bf16.msra.mxu0 0
        %288 = vmatprep.subr.bf16.mxu0 0
        %289 = vmatpush1.bf16.msra.mxu0 0
        %290 = vmatprep.subr.bf16.mxu0 0
        %291 = vmatpush1.bf16.msra.mxu0 0
        %292 = vmatprep.subr.bf16.mxu0 0
        %293 = vmatpush1.bf16.msra.mxu0 0
        %294 = vmatprep.subr.bf16.mxu0 0
        %295 = vmatpush1.bf16.msra.mxu0 %v274
        %296 = vmatprep.subr.bf16.mxu0 0
        %297 = vmatpush2.bf16.msra.mxu0 0
        %298 = vmatprep.subr.bf16.mxu0 0
        %299 = vmatpush2.bf16.msra.mxu0 0
        %300 = vmatprep.subr.bf16.mxu0 0
        %301 = vmatpush2.bf16.msra.mxu0 0
        %302 = vmatprep.subr.bf16.mxu0 0
        %303 = vmatpush2.bf16.msra.mxu0 0
        %304 = vmatprep.subr.bf16.mxu0 0
        %305 = vmatpush2.bf16.msra.mxu0 0
        %306 = vmatprep.subr.bf16.mxu0 0
        %307 = vmatpush2.bf16.msra.mxu0 0
        %308 = vmatprep.subr.bf16.mxu0 0
        %309 = vmatpush2.bf16.msra.mxu0 0
        %310 = vmatprep.subr.bf16.mxu0 0
        %311 = vmatpush2.bf16.msra.mxu0 0
        %312 = vmatprep.mubr.bf16.mxu0 0
        %313 = vmatmul.mubr.bf16.gmra.mxu0 %v278
        %v314 = vpop.f32.mrf.mxu0
        %v315 = vadd.f32 0.0, %v314
        %v316 = vpop.f32.mrf.mxu0
        %v317 = vpop.f32.mrf.mxu0
        %v318 = vadd.f32 0.0, %v317
        %v319 = vpop.f32.mrf.mxu0
        %320 = vdwg.mxu0
        %v321 = vpack.c.bf16 %v318, %v315
        %v326 = vunpack.c.l.b16 %v265
        %v327 = vunpack.c.l.b16 %v266
        %v328 = vunpack.c.l.b16 %v267
        %v329 = vunpack.c.l.b16 %v268
        %v330 = vpack.c.b16 %v327, %v326
        %v331 = vpack.c.b16 %v329, %v328
        %v333 = vsel %vm276, %v330, 0
        %v336 = vsel %vm276, %v331, 0
        %338 = vmatprep.subr.bf16.mxu0 0
        %339 = vmatpush1.bf16.msra.mxu0 0
        %340 = vmatprep.subr.bf16.mxu0 0
        %341 = vmatpush1.bf16.msra.mxu0 0
        %342 = vmatprep.subr.bf16.mxu0 0
        %343 = vmatpush1.bf16.msra.mxu0 0
        %344 = vmatprep.subr.bf16.mxu0 0
        %345 = vmatpush1.bf16.msra.mxu0 0
        %346 = vmatprep.subr.bf16.mxu0 0
        %347 = vmatpush1.bf16.msra.mxu0 0
        %348 = vmatprep.subr.bf16.mxu0 0
        %349 = vmatpush1.bf16.msra.mxu0 0
        %350 = vmatprep.subr.bf16.mxu0 0
        %351 = vmatpush1.bf16.msra.mxu0 0
        %352 = vmatprep.subr.bf16.mxu0 0
        %353 = vmatpush1.bf16.msra.mxu0 %v321
        %354 = vmatprep.subr.bf16.mxu0 0
        %355 = vmatpush2.bf16.msra.mxu0 0
        %356 = vmatprep.subr.bf16.mxu0 0
        %357 = vmatpush2.bf16.msra.mxu0 0
        %358 = vmatprep.subr.bf16.mxu0 0
        %359 = vmatpush2.bf16.msra.mxu0 0
        %360 = vmatprep.subr.bf16.mxu0 0
        %361 = vmatpush2.bf16.msra.mxu0 0
        %362 = vmatprep.subr.bf16.mxu0 0
        %363 = vmatpush2.bf16.msra.mxu0 0
        %364 = vmatprep.subr.bf16.mxu0 0
        %365 = vmatpush2.bf16.msra.mxu0 0
        %366 = vmatprep.subr.bf16.mxu0 0
        %367 = vmatpush2.bf16.msra.mxu0 0
        %368 = vmatprep.subr.bf16.mxu0 0
        %369 = vmatpush2.bf16.msra.mxu0 0
        %370 = vmatprep.mubr.bf16.mxu0 0
        %371 = vmatmul.mubr.bf16.gmra.mxu0 %v333
        %v372 = vpop.f32.mrf.mxu0
        %v373 = vadd.f32 0.0, %v372
        %v374 = vpop.f32.mrf.mxu0
        %v375 = vpop.f32.mrf.mxu0
        %v376 = vadd.f32 0.0, %v375
        %v377 = vpop.f32.mrf.mxu0
        %378 = vmatprep.mubr.bf16.mxu0 0
        %379 = vmatmul.mubr.bf16.gmra.mxu0 %v336
        %v380 = vpop.f32.mrf.mxu0
        %v381 = vadd.f32 0.0, %v380
        %v382 = vpop.f32.mrf.mxu0
        %v383 = vpop.f32.mrf.mxu0
        %v384 = vadd.f32 0.0, %v383
        %v385 = vpop.f32.mrf.mxu0
        %386 = vdwg.mxu0
        %vm387 = vcmask 253952
        %388 = vst.msk [vmem:[#allocation2] sm:$0x1] %vm387, %v373
        %v390 = vrot.slane %v373, 5
        %v391 = vrot.slane %v390, 4
        %392 = vrot.lane.b32.xlu0 %v391, 32
        %v393 = vpop.permute.xlu0 %392
        %vm395 = vcmask 516352
        %396 = vst.msk [vmem:[#allocation2] sm:$0x1] %vm395, %v393
        %v397 = vrot.slane %v373, 6
        %v398 = vrot.slane %v397, 4
        %399 = vrot.lane.b32.xlu0 %v398, 64
        %v400 = vpop.permute.xlu0 %399
        %vm402 = vcmask 778752
        %403 = vst.msk [vmem:[#allocation2] sm:$0x1] %vm402, %v400
        %v404 = vrot.slane %v373, 7
        %v405 = vrot.slane %v404, 4
        %406 = vrot.lane.b32.xlu0 %v405, 96
        %v407 = vpop.permute.xlu0 %406
        %vm409 = vcmask 1041152
        %410 = vst.msk [vmem:[#allocation2] sm:$0x1] %vm409, %v407
        %v411 = vcombine.high %v373, %v373
        %413 = vst.msk [vmem:[#allocation2 + $0x4] sm:$0x1] %vm387, %v411
        %v414 = vrot.slane %v411, 5
        %v415 = vrot.slane %v414, 4
        %416 = vrot.lane.b32.xlu0 %v415, 32
        %v417 = vpop.permute.xlu0 %416
        %419 = vst.msk [vmem:[#allocation2 + $0x4] sm:$0x1] %vm395, %v417
        %v420 = vrot.slane %v411, 6
        %v421 = vrot.slane %v420, 4
        %422 = vrot.lane.b32.xlu0 %v421, 64
        %v423 = vpop.permute.xlu0 %422
        %425 = vst.msk [vmem:[#allocation2 + $0x4] sm:$0x1] %vm402, %v423
        %v426 = vrot.slane %v411, 7
        %v427 = vrot.slane %v426, 4
        %428 = vrot.lane.b32.xlu0 %v427, 96
        %v429 = vpop.permute.xlu0 %428
        %431 = vst.msk [vmem:[#allocation2 + $0x4] sm:$0x1] %vm409, %v429
        %432 = vst.msk [vmem:[#allocation2 + $0x8] sm:$0x1] %vm387, %v376
        %v434 = vrot.slane %v376, 5
        %v435 = vrot.slane %v434, 4
        %436 = vrot.lane.b32.xlu0 %v435, 32
        %v437 = vpop.permute.xlu0 %436
        %439 = vst.msk [vmem:[#allocation2 + $0x8] sm:$0x1] %vm395, %v437
        %v440 = vrot.slane %v376, 6
        %v441 = vrot.slane %v440, 4
        %442 = vrot.lane.b32.xlu0 %v441, 64
        %v443 = vpop.permute.xlu0 %442
        %445 = vst.msk [vmem:[#allocation2 + $0x8] sm:$0x1] %vm402, %v443
        %v446 = vrot.slane %v376, 7
        %v447 = vrot.slane %v446, 4
        %448 = vrot.lane.b32.xlu0 %v447, 96
        %v449 = vpop.permute.xlu0 %448
        %451 = vst.msk [vmem:[#allocation2 + $0x8] sm:$0x1] %vm409, %v449
        %v452 = vcombine.high %v376, %v376
        %454 = vst.msk [vmem:[#allocation2 + $0xc] sm:$0x1] %vm387, %v452
        %v455 = vrot.slane %v452, 5
        %v456 = vrot.slane %v455, 4
        %457 = vrot.lane.b32.xlu0 %v456, 32
        %v458 = vpop.permute.xlu0 %457
        %460 = vst.msk [vmem:[#allocation2 + $0xc] sm:$0x1] %vm395, %v458
        %v461 = vrot.slane %v452, 6
        %v462 = vrot.slane %v461, 4
        %463 = vrot.lane.b32.xlu0 %v462, 64
        %v464 = vpop.permute.xlu0 %463
        %466 = vst.msk [vmem:[#allocation2 + $0xc] sm:$0x1] %vm402, %v464
        %v467 = vrot.slane %v452, 7
        %v468 = vrot.slane %v467, 4
        %469 = vrot.lane.b32.xlu0 %v468, 96
        %v470 = vpop.permute.xlu0 %469
        %472 = vst.msk [vmem:[#allocation2 + $0xc] sm:$0x1] %vm409, %v470
        %473 = vst.msk [vmem:[#allocation2 + $0x10] sm:$0x1] %vm387, %v381
        %v475 = vrot.slane %v381, 5
        %v476 = vrot.slane %v475, 4
        %477 = vrot.lane.b32.xlu0 %v476, 32
        %v478 = vpop.permute.xlu0 %477
        %480 = vst.msk [vmem:[#allocation2 + $0x10] sm:$0x1] %vm395, %v478
        %v481 = vrot.slane %v381, 6
        %v482 = vrot.slane %v481, 4
        %483 = vrot.lane.b32.xlu0 %v482, 64
        %v484 = vpop.permute.xlu0 %483
        %486 = vst.msk [vmem:[#allocation2 + $0x10] sm:$0x1] %vm402, %v484
        %v487 = vrot.slane %v381, 7
        %v488 = vrot.slane %v487, 4
        %489 = vrot.lane.b32.xlu0 %v488, 96
        %v490 = vpop.permute.xlu0 %489
        %492 = vst.msk [vmem:[#allocation2 + $0x10] sm:$0x1] %vm409, %v490
        %v493 = vcombine.high %v381, %v381
        %495 = vst.msk [vmem:[#allocation2 + $0x14] sm:$0x1] %vm387, %v493
        %v496 = vrot.slane %v493, 5
        %v497 = vrot.slane %v496, 4
        %498 = vrot.lane.b32.xlu0 %v497, 32
        %v499 = vpop.permute.xlu0 %498
        %501 = vst.msk [vmem:[#allocation2 + $0x14] sm:$0x1] %vm395, %v499
        %v502 = vrot.slane %v493, 6
        %v503 = vrot.slane %v502, 4
        %504 = vrot.lane.b32.xlu0 %v503, 64
        %v505 = vpop.permute.xlu0 %504
        %507 = vst.msk [vmem:[#allocation2 + $0x14] sm:$0x1] %vm402, %v505
        %v508 = vrot.slane %v493, 7
        %v509 = vrot.slane %v508, 4
        %510 = vrot.lane.b32.xlu0 %v509, 96
        %v511 = vpop.permute.xlu0 %510
        %513 = vst.msk [vmem:[#allocation2 + $0x14] sm:$0x1] %vm409, %v511
        %514 = vst.msk [vmem:[#allocation2 + $0x18] sm:$0x1] %vm387, %v384
        %v516 = vrot.slane %v384, 5
        %v517 = vrot.slane %v516, 4
        %518 = vrot.lane.b32.xlu0 %v517, 32
        %v519 = vpop.permute.xlu0 %518
        %521 = vst.msk [vmem:[#allocation2 + $0x18] sm:$0x1] %vm395, %v519
        %v522 = vrot.slane %v384, 6
        %v523 = vrot.slane %v522, 4
        %524 = vrot.lane.b32.xlu0 %v523, 64
        %v525 = vpop.permute.xlu0 %524
        %527 = vst.msk [vmem:[#allocation2 + $0x18] sm:$0x1] %vm402, %v525
        %v528 = vrot.slane %v384, 7
        %v529 = vrot.slane %v528, 4
        %530 = vrot.lane.b32.xlu0 %v529, 96
        %v531 = vpop.permute.xlu0 %530
        %533 = vst.msk [vmem:[#allocation2 + $0x18] sm:$0x1] %vm409, %v531
        %v534 = vcombine.high %v384, %v384
        %536 = vst.msk [vmem:[#allocation2 + $0x1c] sm:$0x1] %vm387, %v534
        %v537 = vrot.slane %v534, 5
        %v538 = vrot.slane %v537, 4
        %539 = vrot.lane.b32.xlu0 %v538, 32
        %v540 = vpop.permute.xlu0 %539
        %542 = vst.msk [vmem:[#allocation2 + $0x1c] sm:$0x1] %vm395, %v540
        %v543 = vrot.slane %v534, 6
        %v544 = vrot.slane %v543, 4
        %545 = vrot.lane.b32.xlu0 %v544, 64
        %v546 = vpop.permute.xlu0 %545
        %548 = vst.msk [vmem:[#allocation2 + $0x1c] sm:$0x1] %vm402, %v546
        %v549 = vrot.slane %v534, 7
        %v550 = vrot.slane %v549, 4
        %551 = vrot.lane.b32.xlu0 %v550, 96
        %v552 = vpop.permute.xlu0 %551
        %554 = vst.msk [vmem:[#allocation2 + $0x1c] sm:$0x1] %vm409, %v552
        %v555 = vpack.c.bf16 %v258, %v257
        %v557 = vsel %vm276, %v555, 0
        %559 = vmatprep.subr.bf16.mxu0 0
        %560 = vmatpush1.bf16.msra.mxu0 0
        %561 = vmatprep.subr.bf16.mxu0 0
        %562 = vmatpush1.bf16.msra.mxu0 0
        %563 = vmatprep.subr.bf16.mxu0 0
        %564 = vmatpush1.bf16.msra.mxu0 0
        %565 = vmatprep.subr.bf16.mxu0 0
        %566 = vmatpush1.bf16.msra.mxu0 0
        %567 = vmatprep.subr.bf16.mxu0 0
        %568 = vmatpush1.bf16.msra.mxu0 0
        %569 = vmatprep.subr.bf16.mxu0 0
        %570 = vmatpush1.bf16.msra.mxu0 0
        %571 = vmatprep.subr.bf16.mxu0 0
        %572 = vmatpush1.bf16.msra.mxu0 0
        %573 = vmatprep.subr.bf16.mxu0 0
        %574 = vmatpush1.bf16.msra.mxu0 %v274
        %575 = vmatprep.subr.bf16.mxu0 0
        %576 = vmatpush2.bf16.msra.mxu0 0
        %577 = vmatprep.subr.bf16.mxu0 0
        %578 = vmatpush2.bf16.msra.mxu0 0
        %579 = vmatprep.subr.bf16.mxu0 0
        %580 = vmatpush2.bf16.msra.mxu0 0
        %581 = vmatprep.subr.bf16.mxu0 0
        %582 = vmatpush2.bf16.msra.mxu0 0
        %583 = vmatprep.subr.bf16.mxu0 0
        %584 = vmatpush2.bf16.msra.mxu0 0
        %585 = vmatprep.subr.bf16.mxu0 0
        %586 = vmatpush2.bf16.msra.mxu0 0
        %587 = vmatprep.subr.bf16.mxu0 0
        %588 = vmatpush2.bf16.msra.mxu0 0
        %589 = vmatprep.subr.bf16.mxu0 0
        %590 = vmatpush2.bf16.msra.mxu0 0
        %591 = vmatprep.mubr.bf16.mxu0 0
        %592 = vmatmul.mubr.bf16.gmra.mxu0 %v557
        %v593 = vpop.f32.mrf.mxu0
        %v594 = vadd.f32 0.0, %v593
        %v595 = vpop.f32.mrf.mxu0
        %v596 = vpop.f32.mrf.mxu0
        %v597 = vadd.f32 0.0, %v596
        %v598 = vpop.f32.mrf.mxu0
        %599 = vdwg.mxu0
        %v600 = vpack.c.bf16 %v597, %v594
        %601 = vmatprep.subr.bf16.mxu0 0
        %602 = vmatpush1.bf16.msra.mxu0 0
        %603 = vmatprep.subr.bf16.mxu0 0
        %604 = vmatpush1.bf16.msra.mxu0 0
        %605 = vmatprep.subr.bf16.mxu0 0
        %606 = vmatpush1.bf16.msra.mxu0 0
        %607 = vmatprep.subr.bf16.mxu0 0
        %608 = vmatpush1.bf16.msra.mxu0 0
        %609 = vmatprep.subr.bf16.mxu0 0
        %610 = vmatpush1.bf16.msra.mxu0 0
        %611 = vmatprep.subr.bf16.mxu0 0
        %612 = vmatpush1.bf16.msra.mxu0 0
        %613 = vmatprep.subr.bf16.mxu0 0
        %614 = vmatpush1.bf16.msra.mxu0 0
        %615 = vmatprep.subr.bf16.mxu0 0
        %616 = vmatpush1.bf16.msra.mxu0 %v600
        %617 = vmatprep.subr.bf16.mxu0 0
        %618 = vmatpush2.bf16.msra.mxu0 0
        %619 = vmatprep.subr.bf16.mxu0 0
        %620 = vmatpush2.bf16.msra.mxu0 0
        %621 = vmatprep.subr.bf16.mxu0 0
        %622 = vmatpush2.bf16.msra.mxu0 0
        %623 = vmatprep.subr.bf16.mxu0 0
        %624 = vmatpush2.bf16.msra.mxu0 0
        %625 = vmatprep.subr.bf16.mxu0 0
        %626 = vmatpush2.bf16.msra.mxu0 0
        %627 = vmatprep.subr.bf16.mxu0 0
        %628 = vmatpush2.bf16.msra.mxu0 0
        %629 = vmatprep.subr.bf16.mxu0 0
        %630 = vmatpush2.bf16.msra.mxu0 0
        %631 = vmatprep.subr.bf16.mxu0 0
        %632 = vmatpush2.bf16.msra.mxu0 0
        %633 = vmatprep.mubr.bf16.mxu0 0
        %634 = vmatmul.mubr.bf16.gmra.mxu0 %v333
        %v635 = vpop.f32.mrf.mxu0
        %v636 = vadd.f32 0.0, %v635
        %v637 = vpop.f32.mrf.mxu0
        %v638 = vpop.f32.mrf.mxu0
        %v639 = vadd.f32 0.0, %v638
        %v640 = vpop.f32.mrf.mxu0
        %641 = vmatprep.mubr.bf16.mxu0 0
        %642 = vmatmul.mubr.bf16.gmra.mxu0 %v336
        %v643 = vpop.f32.mrf.mxu0
        %v644 = vadd.f32 0.0, %v643
        %v645 = vpop.f32.mrf.mxu0
        %v646 = vpop.f32.mrf.mxu0
        %v647 = vadd.f32 0.0, %v646
        %v648 = vpop.f32.mrf.mxu0
        %649 = vdwg.mxu0
        %650 = vst.msk [vmem:[#allocation2 + $0x1] sm:$0x1] %vm387, %v636
        %v652 = vrot.slane %v636, 5
        %v653 = vrot.slane %v652, 4
        %654 = vrot.lane.b32.xlu0 %v653, 32
        %v655 = vpop.permute.xlu0 %654
        %657 = vst.msk [vmem:[#allocation2 + $0x1] sm:$0x1] %vm395, %v655
        %v658 = vrot.slane %v636, 6
        %v659 = vrot.slane %v658, 4
        %660 = vrot.lane.b32.xlu0 %v659, 64
        %v661 = vpop.permute.xlu0 %660
        %663 = vst.msk [vmem:[#allocation2 + $0x1] sm:$0x1] %vm402, %v661
        %v664 = vrot.slane %v636, 7
        %v665 = vrot.slane %v664, 4
        %666 = vrot.lane.b32.xlu0 %v665, 96
        %v667 = vpop.permute.xlu0 %666
        %669 = vst.msk [vmem:[#allocation2 + $0x1] sm:$0x1] %vm409, %v667
        %v670 = vcombine.high %v636, %v636
        %672 = vst.msk [vmem:[#allocation2 + $0x5] sm:$0x1] %vm387, %v670
        %v673 = vrot.slane %v670, 5
        %v674 = vrot.slane %v673, 4
        %675 = vrot.lane.b32.xlu0 %v674, 32
        %v676 = vpop.permute.xlu0 %675
        %678 = vst.msk [vmem:[#allocation2 + $0x5] sm:$0x1] %vm395, %v676
        %v679 = vrot.slane %v670, 6
        %v680 = vrot.slane %v679, 4
        %681 = vrot.lane.b32.xlu0 %v680, 64
        %v682 = vpop.permute.xlu0 %681
        %684 = vst.msk [vmem:[#allocation2 + $0x5] sm:$0x1] %vm402, %v682
        %v685 = vrot.slane %v670, 7
        %v686 = vrot.slane %v685, 4
        %687 = vrot.lane.b32.xlu0 %v686, 96
        %v688 = vpop.permute.xlu0 %687
        %690 = vst.msk [vmem:[#allocation2 + $0x5] sm:$0x1] %vm409, %v688
        %691 = vst.msk [vmem:[#allocation2 + $0x9] sm:$0x1] %vm387, %v639
        %v693 = vrot.slane %v639, 5
        %v694 = vrot.slane %v693, 4
        %695 = vrot.lane.b32.xlu0 %v694, 32
        %v696 = vpop.permute.xlu0 %695
        %698 = vst.msk [vmem:[#allocation2 + $0x9] sm:$0x1] %vm395, %v696
        %v699 = vrot.slane %v639, 6
        %v700 = vrot.slane %v699, 4
        %701 = vrot.lane.b32.xlu0 %v700, 64
        %v702 = vpop.permute.xlu0 %701
        %704 = vst.msk [vmem:[#allocation2 + $0x9] sm:$0x1] %vm402, %v702
        %v705 = vrot.slane %v639, 7
        %v706 = vrot.slane %v705, 4
        %707 = vrot.lane.b32.xlu0 %v706, 96
        %v708 = vpop.permute.xlu0 %707
        %710 = vst.msk [vmem:[#allocation2 + $0x9] sm:$0x1] %vm409, %v708
        %v711 = vcombine.high %v639, %v639
        %713 = vst.msk [vmem:[#allocation2 + $0xd] sm:$0x1] %vm387, %v711
        %v714 = vrot.slane %v711, 5
        %v715 = vrot.slane %v714, 4
        %716 = vrot.lane.b32.xlu0 %v715, 32
        %v717 = vpop.permute.xlu0 %716
        %719 = vst.msk [vmem:[#allocation2 + $0xd] sm:$0x1] %vm395, %v717
        %v720 = vrot.slane %v711, 6
        %v721 = vrot.slane %v720, 4
        %722 = vrot.lane.b32.xlu0 %v721, 64
        %v723 = vpop.permute.xlu0 %722
        %725 = vst.msk [vmem:[#allocation2 + $0xd] sm:$0x1] %vm402, %v723
        %v726 = vrot.slane %v711, 7
        %v727 = vrot.slane %v726, 4
        %728 = vrot.lane.b32.xlu0 %v727, 96
        %v729 = vpop.permute.xlu0 %728
        %731 = vst.msk [vmem:[#allocation2 + $0xd] sm:$0x1] %vm409, %v729
        %732 = vst.msk [vmem:[#allocation2 + $0x11] sm:$0x1] %vm387, %v644
        %v734 = vrot.slane %v644, 5
        %v735 = vrot.slane %v734, 4
        %736 = vrot.lane.b32.xlu0 %v735, 32
        %v737 = vpop.permute.xlu0 %736
        %739 = vst.msk [vmem:[#allocation2 + $0x11] sm:$0x1] %vm395, %v737
        %v740 = vrot.slane %v644, 6
        %v741 = vrot.slane %v740, 4
        %742 = vrot.lane.b32.xlu0 %v741, 64
        %v743 = vpop.permute.xlu0 %742
        %745 = vst.msk [vmem:[#allocation2 + $0x11] sm:$0x1] %vm402, %v743
        %v746 = vrot.slane %v644, 7
        %v747 = vrot.slane %v746, 4
        %748 = vrot.lane.b32.xlu0 %v747, 96
        %v749 = vpop.permute.xlu0 %748
        %751 = vst.msk [vmem:[#allocation2 + $0x11] sm:$0x1] %vm409, %v749
        %v752 = vcombine.high %v644, %v644
        %754 = vst.msk [vmem:[#allocation2 + $0x15] sm:$0x1] %vm387, %v752
        %v755 = vrot.slane %v752, 5
        %v756 = vrot.slane %v755, 4
        %757 = vrot.lane.b32.xlu0 %v756, 32
        %v758 = vpop.permute.xlu0 %757
        %760 = vst.msk [vmem:[#allocation2 + $0x15] sm:$0x1] %vm395, %v758
        %v761 = vrot.slane %v752, 6
        %v762 = vrot.slane %v761, 4
        %763 = vrot.lane.b32.xlu0 %v762, 64
        %v764 = vpop.permute.xlu0 %763
        %766 = vst.msk [vmem:[#allocation2 + $0x15] sm:$0x1] %vm402, %v764
        %v767 = vrot.slane %v752, 7
        %v768 = vrot.slane %v767, 4
        %769 = vrot.lane.b32.xlu0 %v768, 96
        %v770 = vpop.permute.xlu0 %769
        %772 = vst.msk [vmem:[#allocation2 + $0x15] sm:$0x1] %vm409, %v770
        %773 = vst.msk [vmem:[#allocation2 + $0x19] sm:$0x1] %vm387, %v647
        %v775 = vrot.slane %v647, 5
        %v776 = vrot.slane %v775, 4
        %777 = vrot.lane.b32.xlu0 %v776, 32
        %v778 = vpop.permute.xlu0 %777
        %780 = vst.msk [vmem:[#allocation2 + $0x19] sm:$0x1] %vm395, %v778
        %v781 = vrot.slane %v647, 6
        %v782 = vrot.slane %v781, 4
        %783 = vrot.lane.b32.xlu0 %v782, 64
        %v784 = vpop.permute.xlu0 %783
        %786 = vst.msk [vmem:[#allocation2 + $0x19] sm:$0x1] %vm402, %v784
        %v787 = vrot.slane %v647, 7
        %v788 = vrot.slane %v787, 4
        %789 = vrot.lane.b32.xlu0 %v788, 96
        %v790 = vpop.permute.xlu0 %789
        %792 = vst.msk [vmem:[#allocation2 + $0x19] sm:$0x1] %vm409, %v790
        %v793 = vcombine.high %v647, %v647
        %795 = vst.msk [vmem:[#allocation2 + $0x1d] sm:$0x1] %vm387, %v793
        %v796 = vrot.slane %v793, 5
        %v797 = vrot.slane %v796, 4
        %798 = vrot.lane.b32.xlu0 %v797, 32
        %v799 = vpop.permute.xlu0 %798
        %801 = vst.msk [vmem:[#allocation2 + $0x1d] sm:$0x1] %vm395, %v799
        %v802 = vrot.slane %v793, 6
        %v803 = vrot.slane %v802, 4
        %804 = vrot.lane.b32.xlu0 %v803, 64
        %v805 = vpop.permute.xlu0 %804
        %807 = vst.msk [vmem:[#allocation2 + $0x1d] sm:$0x1] %vm402, %v805
        %v808 = vrot.slane %v793, 7
        %v809 = vrot.slane %v808, 4
        %810 = vrot.lane.b32.xlu0 %v809, 96
        %v811 = vpop.permute.xlu0 %810
        %813 = vst.msk [vmem:[#allocation2 + $0x1d] sm:$0x1] %vm409, %v811
        %v814 = vpack.c.bf16 %v260, %v259
        %v816 = vsel %vm276, %v814, 0
        %818 = vmatprep.subr.bf16.mxu0 0
        %819 = vmatpush1.bf16.msra.mxu0 0
        %820 = vmatprep.subr.bf16.mxu0 0
        %821 = vmatpush1.bf16.msra.mxu0 0
        %822 = vmatprep.subr.bf16.mxu0 0
        %823 = vmatpush1.bf16.msra.mxu0 0
        %824 = vmatprep.subr.bf16.mxu0 0
        %825 = vmatpush1.bf16.msra.mxu0 0
        %826 = vmatprep.subr.bf16.mxu0 0
        %827 = vmatpush1.bf16.msra.mxu0 0
        %828 = vmatprep.subr.bf16.mxu0 0
        %829 = vmatpush1.bf16.msra.mxu0 0
        %830 = vmatprep.subr.bf16.mxu0 0
        %831 = vmatpush1.bf16.msra.mxu0 0
        %832 = vmatprep.subr.bf16.mxu0 0
        %833 = vmatpush1.bf16.msra.mxu0 %v274
        %834 = vmatprep.subr.bf16.mxu0 0
        %835 = vmatpush2.bf16.msra.mxu0 0
        %836 = vmatprep.subr.bf16.mxu0 0
        %837 = vmatpush2.bf16.msra.mxu0 0
        %838 = vmatprep.subr.bf16.mxu0 0
        %839 = vmatpush2.bf16.msra.mxu0 0
        %840 = vmatprep.subr.bf16.mxu0 0
        %841 = vmatpush2.bf16.msra.mxu0 0
        %842 = vmatprep.subr.bf16.mxu0 0
        %843 = vmatpush2.bf16.msra.mxu0 0
        %844 = vmatprep.subr.bf16.mxu0 0
        %845 = vmatpush2.bf16.msra.mxu0 0
        %846 = vmatprep.subr.bf16.mxu0 0
        %847 = vmatpush2.bf16.msra.mxu0 0
        %848 = vmatprep.subr.bf16.mxu0 0
        %849 = vmatpush2.bf16.msra.mxu0 0
        %850 = vmatprep.mubr.bf16.mxu0 0
        %851 = vmatmul.mubr.bf16.gmra.mxu0 %v816
        %v852 = vpop.f32.mrf.mxu0
        %v853 = vadd.f32 0.0, %v852
        %v854 = vpop.f32.mrf.mxu0
        %v855 = vpop.f32.mrf.mxu0
        %v856 = vadd.f32 0.0, %v855
        %v857 = vpop.f32.mrf.mxu0
        %858 = vdwg.mxu0
        %v859 = vpack.c.bf16 %v856, %v853
        %860 = vmatprep.subr.bf16.mxu0 0
        %861 = vmatpush1.bf16.msra.mxu0 0
        %862 = vmatprep.subr.bf16.mxu0 0
        %863 = vmatpush1.bf16.msra.mxu0 0
        %864 = vmatprep.subr.bf16.mxu0 0
        %865 = vmatpush1.bf16.msra.mxu0 0
        %866 = vmatprep.subr.bf16.mxu0 0
        %867 = vmatpush1.bf16.msra.mxu0 0
        %868 = vmatprep.subr.bf16.mxu0 0
        %869 = vmatpush1.bf16.msra.mxu0 0
        %870 = vmatprep.subr.bf16.mxu0 0
        %871 = vmatpush1.bf16.msra.mxu0 0
        %872 = vmatprep.subr.bf16.mxu0 0
        %873 = vmatpush1.bf16.msra.mxu0 0
        %874 = vmatprep.subr.bf16.mxu0 0
        %875 = vmatpush1.bf16.msra.mxu0 %v859
        %876 = vmatprep.subr.bf16.mxu0 0
        %877 = vmatpush2.bf16.msra.mxu0 0
        %878 = vmatprep.subr.bf16.mxu0 0
        %879 = vmatpush2.bf16.msra.mxu0 0
        %880 = vmatprep.subr.bf16.mxu0 0
        %881 = vmatpush2.bf16.msra.mxu0 0
        %882 = vmatprep.subr.bf16.mxu0 0
        %883 = vmatpush2.bf16.msra.mxu0 0
        %884 = vmatprep.subr.bf16.mxu0 0
        %885 = vmatpush2.bf16.msra.mxu0 0
        %886 = vmatprep.subr.bf16.mxu0 0
        %887 = vmatpush2.bf16.msra.mxu0 0
        %888 = vmatprep.subr.bf16.mxu0 0
        %889 = vmatpush2.bf16.msra.mxu0 0
        %890 = vmatprep.subr.bf16.mxu0 0
        %891 = vmatpush2.bf16.msra.mxu0 0
        %892 = vmatprep.mubr.bf16.mxu0 0
        %893 = vmatmul.mubr.bf16.gmra.mxu0 %v333
        %v894 = vpop.f32.mrf.mxu0
        %v895 = vadd.f32 0.0, %v894
        %v896 = vpop.f32.mrf.mxu0
        %v897 = vpop.f32.mrf.mxu0
        %v898 = vadd.f32 0.0, %v897
        %v899 = vpop.f32.mrf.mxu0
        %900 = vmatprep.mubr.bf16.mxu0 0
        %901 = vmatmul.mubr.bf16.gmra.mxu0 %v336
        %v902 = vpop.f32.mrf.mxu0
        %v903 = vadd.f32 0.0, %v902
        %v904 = vpop.f32.mrf.mxu0
        %v905 = vpop.f32.mrf.mxu0
        %v906 = vadd.f32 0.0, %v905
        %v907 = vpop.f32.mrf.mxu0
        %908 = vdwg.mxu0
        %909 = vst.msk [vmem:[#allocation2 + $0x2] sm:$0x1] %vm387, %v895
        %v911 = vrot.slane %v895, 5
        %v912 = vrot.slane %v911, 4
        %913 = vrot.lane.b32.xlu0 %v912, 32
        %v914 = vpop.permute.xlu0 %913
        %916 = vst.msk [vmem:[#allocation2 + $0x2] sm:$0x1] %vm395, %v914
        %v917 = vrot.slane %v895, 6
        %v918 = vrot.slane %v917, 4
        %919 = vrot.lane.b32.xlu0 %v918, 64
        %v920 = vpop.permute.xlu0 %919
        %922 = vst.msk [vmem:[#allocation2 + $0x2] sm:$0x1] %vm402, %v920
        %v923 = vrot.slane %v895, 7
        %v924 = vrot.slane %v923, 4
        %925 = vrot.lane.b32.xlu0 %v924, 96
        %v926 = vpop.permute.xlu0 %925
        %928 = vst.msk [vmem:[#allocation2 + $0x2] sm:$0x1] %vm409, %v926
        %v929 = vcombine.high %v895, %v895
        %931 = vst.msk [vmem:[#allocation2 + $0x6] sm:$0x1] %vm387, %v929
        %v932 = vrot.slane %v929, 5
        %v933 = vrot.slane %v932, 4
        %934 = vrot.lane.b32.xlu0 %v933, 32
        %v935 = vpop.permute.xlu0 %934
        %937 = vst.msk [vmem:[#allocation2 + $0x6] sm:$0x1] %vm395, %v935
        %v938 = vrot.slane %v929, 6
        %v939 = vrot.slane %v938, 4
        %940 = vrot.lane.b32.xlu0 %v939, 64
        %v941 = vpop.permute.xlu0 %940
        %943 = vst.msk [vmem:[#allocation2 + $0x6] sm:$0x1] %vm402, %v941
        %v944 = vrot.slane %v929, 7
        %v945 = vrot.slane %v944, 4
        %946 = vrot.lane.b32.xlu0 %v945, 96
        %v947 = vpop.permute.xlu0 %946
        %949 = vst.msk [vmem:[#allocation2 + $0x6] sm:$0x1] %vm409, %v947
        %950 = vst.msk [vmem:[#allocation2 + $0xa] sm:$0x1] %vm387, %v898
        %v952 = vrot.slane %v898, 5
        %v953 = vrot.slane %v952, 4
        %954 = vrot.lane.b32.xlu0 %v953, 32
        %v955 = vpop.permute.xlu0 %954
        %957 = vst.msk [vmem:[#allocation2 + $0xa] sm:$0x1] %vm395, %v955
        %v958 = vrot.slane %v898, 6
        %v959 = vrot.slane %v958, 4
        %960 = vrot.lane.b32.xlu0 %v959, 64
        %v961 = vpop.permute.xlu0 %960
        %963 = vst.msk [vmem:[#allocation2 + $0xa] sm:$0x1] %vm402, %v961
        %v964 = vrot.slane %v898, 7
        %v965 = vrot.slane %v964, 4
        %966 = vrot.lane.b32.xlu0 %v965, 96
        %v967 = vpop.permute.xlu0 %966
        %969 = vst.msk [vmem:[#allocation2 + $0xa] sm:$0x1] %vm409, %v967
        %v970 = vcombine.high %v898, %v898
        %972 = vst.msk [vmem:[#allocation2 + $0xe] sm:$0x1] %vm387, %v970
        %v973 = vrot.slane %v970, 5
        %v974 = vrot.slane %v973, 4
        %975 = vrot.lane.b32.xlu0 %v974, 32
        %v976 = vpop.permute.xlu0 %975
        %978 = vst.msk [vmem:[#allocation2 + $0xe] sm:$0x1] %vm395, %v976
        %v979 = vrot.slane %v970, 6
        %v980 = vrot.slane %v979, 4
        %981 = vrot.lane.b32.xlu0 %v980, 64
        %v982 = vpop.permute.xlu0 %981
        %984 = vst.msk [vmem:[#allocation2 + $0xe] sm:$0x1] %vm402, %v982
        %v985 = vrot.slane %v970, 7
        %v986 = vrot.slane %v985, 4
        %987 = vrot.lane.b32.xlu0 %v986, 96
        %v988 = vpop.permute.xlu0 %987
        %990 = vst.msk [vmem:[#allocation2 + $0xe] sm:$0x1] %vm409, %v988
        %991 = vst.msk [vmem:[#allocation2 + $0x12] sm:$0x1] %vm387, %v903
        %v993 = vrot.slane %v903, 5
        %v994 = vrot.slane %v993, 4
        %995 = vrot.lane.b32.xlu0 %v994, 32
        %v996 = vpop.permute.xlu0 %995
        %998 = vst.msk [vmem:[#allocation2 + $0x12] sm:$0x1] %vm395, %v996
        %v999 = vrot.slane %v903, 6
        %v1000 = vrot.slane %v999, 4
        %1001 = vrot.lane.b32.xlu0 %v1000, 64
        %v1002 = vpop.permute.xlu0 %1001
        %1004 = vst.msk [vmem:[#allocation2 + $0x12] sm:$0x1] %vm402, %v1002
        %v1005 = vrot.slane %v903, 7
        %v1006 = vrot.slane %v1005, 4
        %1007 = vrot.lane.b32.xlu0 %v1006, 96
        %v1008 = vpop.permute.xlu0 %1007
        %1010 = vst.msk [vmem:[#allocation2 + $0x12] sm:$0x1] %vm409, %v1008
        %v1011 = vcombine.high %v903, %v903
        %1013 = vst.msk [vmem:[#allocation2 + $0x16] sm:$0x1] %vm387, %v1011
        %v1014 = vrot.slane %v1011, 5
        %v1015 = vrot.slane %v1014, 4
        %1016 = vrot.lane.b32.xlu0 %v1015, 32
        %v1017 = vpop.permute.xlu0 %1016
        %1019 = vst.msk [vmem:[#allocation2 + $0x16] sm:$0x1] %vm395, %v1017
        %v1020 = vrot.slane %v1011, 6
        %v1021 = vrot.slane %v1020, 4
        %1022 = vrot.lane.b32.xlu0 %v1021, 64
        %v1023 = vpop.permute.xlu0 %1022
        %1025 = vst.msk [vmem:[#allocation2 + $0x16] sm:$0x1] %vm402, %v1023
        %v1026 = vrot.slane %v1011, 7
        %v1027 = vrot.slane %v1026, 4
        %1028 = vrot.lane.b32.xlu0 %v1027, 96
        %v1029 = vpop.permute.xlu0 %1028
        %1031 = vst.msk [vmem:[#allocation2 + $0x16] sm:$0x1] %vm409, %v1029
        %1032 = vst.msk [vmem:[#allocation2 + $0x1a] sm:$0x1] %vm387, %v906
        %v1034 = vrot.slane %v906, 5
        %v1035 = vrot.slane %v1034, 4
        %1036 = vrot.lane.b32.xlu0 %v1035, 32
        %v1037 = vpop.permute.xlu0 %1036
        %1039 = vst.msk [vmem:[#allocation2 + $0x1a] sm:$0x1] %vm395, %v1037
        %v1040 = vrot.slane %v906, 6
        %v1041 = vrot.slane %v1040, 4
        %1042 = vrot.lane.b32.xlu0 %v1041, 64
        %v1043 = vpop.permute.xlu0 %1042
        %1045 = vst.msk [vmem:[#allocation2 + $0x1a] sm:$0x1] %vm402, %v1043
        %v1046 = vrot.slane %v906, 7
        %v1047 = vrot.slane %v1046, 4
        %1048 = vrot.lane.b32.xlu0 %v1047, 96
        %v1049 = vpop.permute.xlu0 %1048
        %1051 = vst.msk [vmem:[#allocation2 + $0x1a] sm:$0x1] %vm409, %v1049
        %v1052 = vcombine.high %v906, %v906
        %1054 = vst.msk [vmem:[#allocation2 + $0x1e] sm:$0x1] %vm387, %v1052
        %v1055 = vrot.slane %v1052, 5
        %v1056 = vrot.slane %v1055, 4
        %1057 = vrot.lane.b32.xlu0 %v1056, 32
        %v1058 = vpop.permute.xlu0 %1057
        %1060 = vst.msk [vmem:[#allocation2 + $0x1e] sm:$0x1] %vm395, %v1058
        %v1061 = vrot.slane %v1052, 6
        %v1062 = vrot.slane %v1061, 4
        %1063 = vrot.lane.b32.xlu0 %v1062, 64
        %v1064 = vpop.permute.xlu0 %1063
        %1066 = vst.msk [vmem:[#allocation2 + $0x1e] sm:$0x1] %vm402, %v1064
        %v1067 = vrot.slane %v1052, 7
        %v1068 = vrot.slane %v1067, 4
        %1069 = vrot.lane.b32.xlu0 %v1068, 96
        %v1070 = vpop.permute.xlu0 %1069
        %1072 = vst.msk [vmem:[#allocation2 + $0x1e] sm:$0x1] %vm409, %v1070
        %v1073 = vpack.c.bf16 %v262, %v261
        %v1075 = vsel %vm276, %v1073, 0
        %1077 = vmatprep.subr.bf16.mxu0 0
        %1078 = vmatpush1.bf16.msra.mxu0 0
        %1079 = vmatprep.subr.bf16.mxu0 0
        %1080 = vmatpush1.bf16.msra.mxu0 0
        %1081 = vmatprep.subr.bf16.mxu0 0
        %1082 = vmatpush1.bf16.msra.mxu0 0
        %1083 = vmatprep.subr.bf16.mxu0 0
        %1084 = vmatpush1.bf16.msra.mxu0 0
        %1085 = vmatprep.subr.bf16.mxu0 0
        %1086 = vmatpush1.bf16.msra.mxu0 0
        %1087 = vmatprep.subr.bf16.mxu0 0
        %1088 = vmatpush1.bf16.msra.mxu0 0
        %1089 = vmatprep.subr.bf16.mxu0 0
        %1090 = vmatpush1.bf16.msra.mxu0 0
        %1091 = vmatprep.subr.bf16.mxu0 0
        %1092 = vmatpush1.bf16.msra.mxu0 %v274
        %1093 = vmatprep.subr.bf16.mxu0 0
        %1094 = vmatpush2.bf16.msra.mxu0 0
        %1095 = vmatprep.subr.bf16.mxu0 0
        %1096 = vmatpush2.bf16.msra.mxu0 0
        %1097 = vmatprep.subr.bf16.mxu0 0
        %1098 = vmatpush2.bf16.msra.mxu0 0
        %1099 = vmatprep.subr.bf16.mxu0 0
        %1100 = vmatpush2.bf16.msra.mxu0 0
        %1101 = vmatprep.subr.bf16.mxu0 0
        %1102 = vmatpush2.bf16.msra.mxu0 0
        %1103 = vmatprep.subr.bf16.mxu0 0
        %1104 = vmatpush2.bf16.msra.mxu0 0
        %1105 = vmatprep.subr.bf16.mxu0 0
        %1106 = vmatpush2.bf16.msra.mxu0 0
        %1107 = vmatprep.subr.bf16.mxu0 0
        %1108 = vmatpush2.bf16.msra.mxu0 0
        %1109 = vmatprep.mubr.bf16.mxu0 0
        %1110 = vmatmul.mubr.bf16.gmra.mxu0 %v1075
        %v1111 = vpop.f32.mrf.mxu0
        %v1112 = vadd.f32 0.0, %v1111
        %v1113 = vpop.f32.mrf.mxu0
        %v1114 = vpop.f32.mrf.mxu0
        %v1115 = vadd.f32 0.0, %v1114
        %v1116 = vpop.f32.mrf.mxu0
        %1117 = vdwg.mxu0
        %v1118 = vpack.c.bf16 %v1115, %v1112
        %1119 = vmatprep.subr.bf16.mxu0 0
        %1120 = vmatpush1.bf16.msra.mxu0 0
        %1121 = vmatprep.subr.bf16.mxu0 0
        %1122 = vmatpush1.bf16.msra.mxu0 0
        %1123 = vmatprep.subr.bf16.mxu0 0
        %1124 = vmatpush1.bf16.msra.mxu0 0
        %1125 = vmatprep.subr.bf16.mxu0 0
        %1126 = vmatpush1.bf16.msra.mxu0 0
        %1127 = vmatprep.subr.bf16.mxu0 0
        %1128 = vmatpush1.bf16.msra.mxu0 0
        %1129 = vmatprep.subr.bf16.mxu0 0
        %1130 = vmatpush1.bf16.msra.mxu0 0
        %1131 = vmatprep.subr.bf16.mxu0 0
        %1132 = vmatpush1.bf16.msra.mxu0 0
        %1133 = vmatprep.subr.bf16.mxu0 0
        %1134 = vmatpush1.bf16.msra.mxu0 %v1118
        %1135 = vmatprep.subr.bf16.mxu0 0
        %1136 = vmatpush2.bf16.msra.mxu0 0
        %1137 = vmatprep.subr.bf16.mxu0 0
        %1138 = vmatpush2.bf16.msra.mxu0 0
        %1139 = vmatprep.subr.bf16.mxu0 0
        %1140 = vmatpush2.bf16.msra.mxu0 0
        %1141 = vmatprep.subr.bf16.mxu0 0
        %1142 = vmatpush2.bf16.msra.mxu0 0
        %1143 = vmatprep.subr.bf16.mxu0 0
        %1144 = vmatpush2.bf16.msra.mxu0 0
        %1145 = vmatprep.subr.bf16.mxu0 0
        %1146 = vmatpush2.bf16.msra.mxu0 0
        %1147 = vmatprep.subr.bf16.mxu0 0
        %1148 = vmatpush2.bf16.msra.mxu0 0
        %1149 = vmatprep.subr.bf16.mxu0 0
        %1150 = vmatpush2.bf16.msra.mxu0 0
        %1151 = vmatprep.mubr.bf16.mxu0 0
        %1152 = vmatmul.mubr.bf16.gmra.mxu0 %v333
        %v1153 = vpop.f32.mrf.mxu0
        %v1154 = vadd.f32 0.0, %v1153
        %v1155 = vpop.f32.mrf.mxu0
        %v1156 = vpop.f32.mrf.mxu0
        %v1157 = vadd.f32 0.0, %v1156
        %v1158 = vpop.f32.mrf.mxu0
        %1159 = vmatprep.mubr.bf16.mxu0 0
        %1160 = vmatmul.mubr.bf16.gmra.mxu0 %v336
        %v1161 = vpop.f32.mrf.mxu0
        %v1162 = vadd.f32 0.0, %v1161
        %v1163 = vpop.f32.mrf.mxu0
        %v1164 = vpop.f32.mrf.mxu0
        %v1165 = vadd.f32 0.0, %v1164
        %v1166 = vpop.f32.mrf.mxu0
        %1167 = vdwg.mxu0
        %1168 = vst.msk [vmem:[#allocation2 + $0x3] sm:$0x1] %vm387, %v1154
        %v1170 = vrot.slane %v1154, 5
        %v1171 = vrot.slane %v1170, 4
        %1172 = vrot.lane.b32.xlu0 %v1171, 32
        %v1173 = vpop.permute.xlu0 %1172
        %1175 = vst.msk [vmem:[#allocation2 + $0x3] sm:$0x1] %vm395, %v1173
        %v1176 = vrot.slane %v1154, 6
        %v1177 = vrot.slane %v1176, 4
        %1178 = vrot.lane.b32.xlu0 %v1177, 64
        %v1179 = vpop.permute.xlu0 %1178
        %1181 = vst.msk [vmem:[#allocation2 + $0x3] sm:$0x1] %vm402, %v1179
        %v1182 = vrot.slane %v1154, 7
        %v1183 = vrot.slane %v1182, 4
        %1184 = vrot.lane.b32.xlu0 %v1183, 96
        %v1185 = vpop.permute.xlu0 %1184
        %1187 = vst.msk [vmem:[#allocation2 + $0x3] sm:$0x1] %vm409, %v1185
        %v1188 = vcombine.high %v1154, %v1154
        %1190 = vst.msk [vmem:[#allocation2 + $0x7] sm:$0x1] %vm387, %v1188
        %v1191 = vrot.slane %v1188, 5
        %v1192 = vrot.slane %v1191, 4
        %1193 = vrot.lane.b32.xlu0 %v1192, 32
        %v1194 = vpop.permute.xlu0 %1193
        %1196 = vst.msk [vmem:[#allocation2 + $0x7] sm:$0x1] %vm395, %v1194
        %v1197 = vrot.slane %v1188, 6
        %v1198 = vrot.slane %v1197, 4
        %1199 = vrot.lane.b32.xlu0 %v1198, 64
        %v1200 = vpop.permute.xlu0 %1199
        %1202 = vst.msk [vmem:[#allocation2 + $0x7] sm:$0x1] %vm402, %v1200
        %v1203 = vrot.slane %v1188, 7
        %v1204 = vrot.slane %v1203, 4
        %1205 = vrot.lane.b32.xlu0 %v1204, 96
        %v1206 = vpop.permute.xlu0 %1205
        %1208 = vst.msk [vmem:[#allocation2 + $0x7] sm:$0x1] %vm409, %v1206
        %1209 = vst.msk [vmem:[#allocation2 + $0xb] sm:$0x1] %vm387, %v1157
        %v1211 = vrot.slane %v1157, 5
        %v1212 = vrot.slane %v1211, 4
        %1213 = vrot.lane.b32.xlu0 %v1212, 32
        %v1214 = vpop.permute.xlu0 %1213
        %1216 = vst.msk [vmem:[#allocation2 + $0xb] sm:$0x1] %vm395, %v1214
        %v1217 = vrot.slane %v1157, 6
        %v1218 = vrot.slane %v1217, 4
        %1219 = vrot.lane.b32.xlu0 %v1218, 64
        %v1220 = vpop.permute.xlu0 %1219
        %1222 = vst.msk [vmem:[#allocation2 + $0xb] sm:$0x1] %vm402, %v1220
        %v1223 = vrot.slane %v1157, 7
        %v1224 = vrot.slane %v1223, 4
        %1225 = vrot.lane.b32.xlu0 %v1224, 96
        %v1226 = vpop.permute.xlu0 %1225
        %1228 = vst.msk [vmem:[#allocation2 + $0xb] sm:$0x1] %vm409, %v1226
        %v1229 = vcombine.high %v1157, %v1157
        %1231 = vst.msk [vmem:[#allocation2 + $0xf] sm:$0x1] %vm387, %v1229
        %v1232 = vrot.slane %v1229, 5
        %v1233 = vrot.slane %v1232, 4
        %1234 = vrot.lane.b32.xlu0 %v1233, 32
        %v1235 = vpop.permute.xlu0 %1234
        %1237 = vst.msk [vmem:[#allocation2 + $0xf] sm:$0x1] %vm395, %v1235
        %v1238 = vrot.slane %v1229, 6
        %v1239 = vrot.slane %v1238, 4
        %1240 = vrot.lane.b32.xlu0 %v1239, 64
        %v1241 = vpop.permute.xlu0 %1240
        %1243 = vst.msk [vmem:[#allocation2 + $0xf] sm:$0x1] %vm402, %v1241
        %v1244 = vrot.slane %v1229, 7
        %v1245 = vrot.slane %v1244, 4
        %1246 = vrot.lane.b32.xlu0 %v1245, 96
        %v1247 = vpop.permute.xlu0 %1246
        %1249 = vst.msk [vmem:[#allocation2 + $0xf] sm:$0x1] %vm409, %v1247
        %1250 = vst.msk [vmem:[#allocation2 + $0x13] sm:$0x1] %vm387, %v1162
        %v1252 = vrot.slane %v1162, 5
        %v1253 = vrot.slane %v1252, 4
        %1254 = vrot.lane.b32.xlu0 %v1253, 32
        %v1255 = vpop.permute.xlu0 %1254
        %1257 = vst.msk [vmem:[#allocation2 + $0x13] sm:$0x1] %vm395, %v1255
        %v1258 = vrot.slane %v1162, 6
        %v1259 = vrot.slane %v1258, 4
        %1260 = vrot.lane.b32.xlu0 %v1259, 64
        %v1261 = vpop.permute.xlu0 %1260
        %1263 = vst.msk [vmem:[#allocation2 + $0x13] sm:$0x1] %vm402, %v1261
        %v1264 = vrot.slane %v1162, 7
        %v1265 = vrot.slane %v1264, 4
        %1266 = vrot.lane.b32.xlu0 %v1265, 96
        %v1267 = vpop.permute.xlu0 %1266
        %1269 = vst.msk [vmem:[#allocation2 + $0x13] sm:$0x1] %vm409, %v1267
        %v1270 = vcombine.high %v1162, %v1162
        %1272 = vst.msk [vmem:[#allocation2 + $0x17] sm:$0x1] %vm387, %v1270
        %v1273 = vrot.slane %v1270, 5
        %v1274 = vrot.slane %v1273, 4
        %1275 = vrot.lane.b32.xlu0 %v1274, 32
        %v1276 = vpop.permute.xlu0 %1275
        %1278 = vst.msk [vmem:[#allocation2 + $0x17] sm:$0x1] %vm395, %v1276
        %v1279 = vrot.slane %v1270, 6
        %v1280 = vrot.slane %v1279, 4
        %1281 = vrot.lane.b32.xlu0 %v1280, 64
        %v1282 = vpop.permute.xlu0 %1281
        %1284 = vst.msk [vmem:[#allocation2 + $0x17] sm:$0x1] %vm402, %v1282
        %v1285 = vrot.slane %v1270, 7
        %v1286 = vrot.slane %v1285, 4
        %1287 = vrot.lane.b32.xlu0 %v1286, 96
        %v1288 = vpop.permute.xlu0 %1287
        %1290 = vst.msk [vmem:[#allocation2 + $0x17] sm:$0x1] %vm409, %v1288
        %1291 = vst.msk [vmem:[#allocation2 + $0x1b] sm:$0x1] %vm387, %v1165
        %v1293 = vrot.slane %v1165, 5
        %v1294 = vrot.slane %v1293, 4
        %1295 = vrot.lane.b32.xlu0 %v1294, 32
        %v1296 = vpop.permute.xlu0 %1295
        %1298 = vst.msk [vmem:[#allocation2 + $0x1b] sm:$0x1] %vm395, %v1296
        %v1299 = vrot.slane %v1165, 6
        %v1300 = vrot.slane %v1299, 4
        %1301 = vrot.lane.b32.xlu0 %v1300, 64
        %v1302 = vpop.permute.xlu0 %1301
        %1304 = vst.msk [vmem:[#allocation2 + $0x1b] sm:$0x1] %vm402, %v1302
        %v1305 = vrot.slane %v1165, 7
        %v1306 = vrot.slane %v1305, 4
        %1307 = vrot.lane.b32.xlu0 %v1306, 96
        %v1308 = vpop.permute.xlu0 %1307
        %1310 = vst.msk [vmem:[#allocation2 + $0x1b] sm:$0x1] %vm409, %v1308
        %v1311 = vcombine.high %v1165, %v1165
        %1313 = vst.msk [vmem:[#allocation2 + $0x1f] sm:$0x1] %vm387, %v1311
        %v1314 = vrot.slane %v1311, 5
        %v1315 = vrot.slane %v1314, 4
        %1316 = vrot.lane.b32.xlu0 %v1315, 32
        %v1317 = vpop.permute.xlu0 %1316
        %1319 = vst.msk [vmem:[#allocation2 + $0x1f] sm:$0x1] %vm395, %v1317
        %v1320 = vrot.slane %v1311, 6
        %v1321 = vrot.slane %v1320, 4
        %1322 = vrot.lane.b32.xlu0 %v1321, 64
        %v1323 = vpop.permute.xlu0 %1322
        %1325 = vst.msk [vmem:[#allocation2 + $0x1f] sm:$0x1] %vm402, %v1323
        %v1326 = vrot.slane %v1311, 7
        %v1327 = vrot.slane %v1326, 4
        %1328 = vrot.lane.b32.xlu0 %v1327, 96
        %v1329 = vpop.permute.xlu0 %1328
        %1331 = vst.msk [vmem:[#allocation2 + $0x1f] sm:$0x1] %vm409, %v1329
        %v1332 = vld [vmem:[%s3] sm:$0xf]
        %v1333 = vld [vmem:[#allocation2] sm:$0xff]
        %v1334 = vld [vmem:[#allocation2 + $0x8] sm:$0xff]
        %v1335 = vld [vmem:[#allocation2 + $0x10] sm:$0xff]
        %v1336 = vld [vmem:[#allocation2 + $0x18] sm:$0xff]
        %v1341 = vcombine.high %v1333, %v1333
        %v1342 = vcombine.high %v1334, %v1334
        %v1343 = vcombine.high %v1335, %v1335
        %v1344 = vcombine.high %v1336, %v1336
        %v1349 = vpack.c.bf16 %v1333, %v1333
        %v1350 = vpack.c.bf16 %v1341, %v1341
        %v1351 = vpack.c.bf16 %v1334, %v1334
        %v1352 = vpack.c.bf16 %v1342, %v1342
        %v1353 = vpack.c.bf16 %v1335, %v1335
        %v1354 = vpack.c.bf16 %v1343, %v1343
        %v1355 = vpack.c.bf16 %v1336, %v1336
        %v1356 = vpack.c.bf16 %v1344, %v1344
        %vm1357 = vcmask 31744
        %v1359 = vsel %vm1357, %v1332, 0
        %vm1361 = vcmask 1041408
        %v1363 = vsel %vm1361, %v1349, 0
        %v1366 = vsel %vm1361, %v1350, 0
        %v1369 = vsel %vm1361, %v1351, 0
        %v1372 = vsel %vm1361, %v1352, 0
        %v1375 = vsel %vm1361, %v1353, 0
        %v1378 = vsel %vm1361, %v1354, 0
        %v1381 = vsel %vm1361, %v1355, 0
        %v1384 = vsel %vm1361, %v1356, 0
        %1386 = vmatprep.subr.bf16.mxu0 0
        %1387 = vmatpush1.bf16.msra.mxu0 0
        %1388 = vmatprep.subr.bf16.mxu0 0
        %1389 = vmatpush1.bf16.msra.mxu0 0
        %1390 = vmatprep.subr.bf16.mxu0 0
        %1391 = vmatpush1.bf16.msra.mxu0 0
        %1392 = vmatprep.subr.bf16.mxu0 0
        %1393 = vmatpush1.bf16.msra.mxu0 0
        %1394 = vmatprep.subr.bf16.mxu0 0
        %1395 = vmatpush1.bf16.msra.mxu0 0
        %1396 = vmatprep.subr.bf16.mxu0 0
        %1397 = vmatpush1.bf16.msra.mxu0 0
        %1398 = vmatprep.subr.bf16.mxu0 0
        %1399 = vmatpush1.bf16.msra.mxu0 0
        %1400 = vmatprep.subr.bf16.mxu0 %v1366
        %1401 = vmatpush1.bf16.msra.mxu0 %v1363
        %1402 = vmatprep.subr.bf16.mxu0 0
        %1403 = vmatpush2.bf16.msra.mxu0 0
        %1404 = vmatprep.subr.bf16.mxu0 0
        %1405 = vmatpush2.bf16.msra.mxu0 0
        %1406 = vmatprep.subr.bf16.mxu0 0
        %1407 = vmatpush2.bf16.msra.mxu0 0
        %1408 = vmatprep.subr.bf16.mxu0 0
        %1409 = vmatpush2.bf16.msra.mxu0 0
        %1410 = vmatprep.subr.bf16.mxu0 0
        %1411 = vmatpush2.bf16.msra.mxu0 0
        %1412 = vmatprep.subr.bf16.mxu0 0
        %1413 = vmatpush2.bf16.msra.mxu0 0
        %1414 = vmatprep.subr.bf16.mxu0 0
        %1415 = vmatpush2.bf16.msra.mxu0 0
        %1416 = vmatprep.subr.bf16.mxu0 0
        %1417 = vmatpush2.bf16.msra.mxu0 0
        %1418 = vmatprep.mubr.bf16.mxu0 0
        %1419 = vmatmul.mubr.bf16.gmra.mxu0 %v1359
        %v1420 = vpop.f32.mrf.mxu0
        %v1421 = vadd.f32 0.0, %v1420
        %v1422 = vpop.f32.mrf.mxu0
        %v1423 = vadd.f32 0.0, %v1422
        %v1424 = vpop.f32.mrf.mxu0
        %v1425 = vpop.f32.mrf.mxu0
        %1426 = vdwg.mxu0
        %1427 = vmatprep.subr.bf16.mxu0 0
        %1428 = vmatpush1.bf16.msra.mxu0 0
        %1429 = vmatprep.subr.bf16.mxu0 0
        %1430 = vmatpush1.bf16.msra.mxu0 0
        %1431 = vmatprep.subr.bf16.mxu0 0
        %1432 = vmatpush1.bf16.msra.mxu0 0
        %1433 = vmatprep.subr.bf16.mxu0 0
        %1434 = vmatpush1.bf16.msra.mxu0 0
        %1435 = vmatprep.subr.bf16.mxu0 0
        %1436 = vmatpush1.bf16.msra.mxu0 0
        %1437 = vmatprep.subr.bf16.mxu0 0
        %1438 = vmatpush1.bf16.msra.mxu0 0
        %1439 = vmatprep.subr.bf16.mxu0 0
        %1440 = vmatpush1.bf16.msra.mxu0 0
        %1441 = vmatprep.subr.bf16.mxu0 %v1372
        %1442 = vmatpush1.bf16.msra.mxu0 %v1369
        %1443 = vmatprep.subr.bf16.mxu0 0
        %1444 = vmatpush2.bf16.msra.mxu0 0
        %1445 = vmatprep.subr.bf16.mxu0 0
        %1446 = vmatpush2.bf16.msra.mxu0 0
        %1447 = vmatprep.subr.bf16.mxu0 0
        %1448 = vmatpush2.bf16.msra.mxu0 0
        %1449 = vmatprep.subr.bf16.mxu0 0
        %1450 = vmatpush2.bf16.msra.mxu0 0
        %1451 = vmatprep.subr.bf16.mxu0 0
        %1452 = vmatpush2.bf16.msra.mxu0 0
        %1453 = vmatprep.subr.bf16.mxu0 0
        %1454 = vmatpush2.bf16.msra.mxu0 0
        %1455 = vmatprep.subr.bf16.mxu0 0
        %1456 = vmatpush2.bf16.msra.mxu0 0
        %1457 = vmatprep.subr.bf16.mxu0 0
        %1458 = vmatpush2.bf16.msra.mxu0 0
        %1459 = vmatprep.mubr.bf16.mxu0 0
        %1460 = vmatmul.mubr.bf16.gmra.mxu0 %v1359
        %v1461 = vpop.f32.mrf.mxu0
        %v1462 = vadd.f32 0.0, %v1461
        %v1463 = vpop.f32.mrf.mxu0
        %v1464 = vadd.f32 0.0, %v1463
        %v1465 = vpop.f32.mrf.mxu0
        %v1466 = vpop.f32.mrf.mxu0
        %1467 = vdwg.mxu0
        %1468 = vmatprep.subr.bf16.mxu0 0
        %1469 = vmatpush1.bf16.msra.mxu0 0
        %1470 = vmatprep.subr.bf16.mxu0 0
        %1471 = vmatpush1.bf16.msra.mxu0 0
        %1472 = vmatprep.subr.bf16.mxu0 0
        %1473 = vmatpush1.bf16.msra.mxu0 0
        %1474 = vmatprep.subr.bf16.mxu0 0
        %1475 = vmatpush1.bf16.msra.mxu0 0
        %1476 = vmatprep.subr.bf16.mxu0 0
        %1477 = vmatpush1.bf16.msra.mxu0 0
        %1478 = vmatprep.subr.bf16.mxu0 0
        %1479 = vmatpush1.bf16.msra.mxu0 0
        %1480 = vmatprep.subr.bf16.mxu0 0
        %1481 = vmatpush1.bf16.msra.mxu0 0
        %1482 = vmatprep.subr.bf16.mxu0 %v1378
        %1483 = vmatpush1.bf16.msra.mxu0 %v1375
        %1484 = vmatprep.subr.bf16.mxu0 0
        %1485 = vmatpush2.bf16.msra.mxu0 0
        %1486 = vmatprep.subr.bf16.mxu0 0
        %1487 = vmatpush2.bf16.msra.mxu0 0
        %1488 = vmatprep.subr.bf16.mxu0 0
        %1489 = vmatpush2.bf16.msra.mxu0 0
        %1490 = vmatprep.subr.bf16.mxu0 0
        %1491 = vmatpush2.bf16.msra.mxu0 0
        %1492 = vmatprep.subr.bf16.mxu0 0
        %1493 = vmatpush2.bf16.msra.mxu0 0
        %1494 = vmatprep.subr.bf16.mxu0 0
        %1495 = vmatpush2.bf16.msra.mxu0 0
        %1496 = vmatprep.subr.bf16.mxu0 0
        %1497 = vmatpush2.bf16.msra.mxu0 0
        %1498 = vmatprep.subr.bf16.mxu0 0
        %1499 = vmatpush2.bf16.msra.mxu0 0
        %1500 = vmatprep.mubr.bf16.mxu0 0
        %1501 = vmatmul.mubr.bf16.gmra.mxu0 %v1359
        %v1502 = vpop.f32.mrf.mxu0
        %v1503 = vadd.f32 0.0, %v1502
        %v1504 = vpop.f32.mrf.mxu0
        %v1505 = vadd.f32 0.0, %v1504
        %v1506 = vpop.f32.mrf.mxu0
        %v1507 = vpop.f32.mrf.mxu0
        %1508 = vdwg.mxu0
        %1509 = vmatprep.subr.bf16.mxu0 0
        %1510 = vmatpush1.bf16.msra.mxu0 0
        %1511 = vmatprep.subr.bf16.mxu0 0
        %1512 = vmatpush1.bf16.msra.mxu0 0
        %1513 = vmatprep.subr.bf16.mxu0 0
        %1514 = vmatpush1.bf16.msra.mxu0 0
        %1515 = vmatprep.subr.bf16.mxu0 0
        %1516 = vmatpush1.bf16.msra.mxu0 0
        %1517 = vmatprep.subr.bf16.mxu0 0
        %1518 = vmatpush1.bf16.msra.mxu0 0
        %1519 = vmatprep.subr.bf16.mxu0 0
        %1520 = vmatpush1.bf16.msra.mxu0 0
        %1521 = vmatprep.subr.bf16.mxu0 0
        %1522 = vmatpush1.bf16.msra.mxu0 0
        %1523 = vmatprep.subr.bf16.mxu0 %v1384
        %1524 = vmatpush1.bf16.msra.mxu0 %v1381
        %1525 = vmatprep.subr.bf16.mxu0 0
        %1526 = vmatpush2.bf16.msra.mxu0 0
        %1527 = vmatprep.subr.bf16.mxu0 0
        %1528 = vmatpush2.bf16.msra.mxu0 0
        %1529 = vmatprep.subr.bf16.mxu0 0
        %1530 = vmatpush2.bf16.msra.mxu0 0
        %1531 = vmatprep.subr.bf16.mxu0 0
        %1532 = vmatpush2.bf16.msra.mxu0 0
        %1533 = vmatprep.subr.bf16.mxu0 0
        %1534 = vmatpush2.bf16.msra.mxu0 0
        %1535 = vmatprep.subr.bf16.mxu0 0
        %1536 = vmatpush2.bf16.msra.mxu0 0
        %1537 = vmatprep.subr.bf16.mxu0 0
        %1538 = vmatpush2.bf16.msra.mxu0 0
        %1539 = vmatprep.subr.bf16.mxu0 0
        %1540 = vmatpush2.bf16.msra.mxu0 0
        %1541 = vmatprep.mubr.bf16.mxu0 0
        %1542 = vmatmul.mubr.bf16.gmra.mxu0 %v1359
        %v1543 = vpop.f32.mrf.mxu0
        %v1544 = vadd.f32 0.0, %v1543
        %v1545 = vpop.f32.mrf.mxu0
        %v1546 = vadd.f32 0.0, %v1545
        %v1547 = vpop.f32.mrf.mxu0
        %v1548 = vpop.f32.mrf.mxu0
        %1549 = vdwg.mxu0
        %1550 = vst [vmem:[%s243] sm:$0xff] %v1421
        %1551 = vst [vmem:[%s243 + $0x8] sm:$0xff] %v1423
        %1552 = vst [vmem:[%s243 + $0x10] sm:$0xff] %v1462
        %1553 = vst [vmem:[%s243 + $0x18] sm:$0xff] %v1464
        %1554 = vst [vmem:[%s243 + $0x20] sm:$0xff] %v1503
        %1555 = vst [vmem:[%s243 + $0x28] sm:$0xff] %v1505
        %1556 = vst [vmem:[%s243 + $0x30] sm:$0xff] %v1544
        %1557 = vst [vmem:[%s243 + $0x38] sm:$0xff] %v1546
        %v1558 = vadd.f32 %v1421, %v1423
        %v1559 = vadd.f32 %v1558, %v1462
        %v1560 = vadd.f32 %v1559, %v1464
        %v1561 = vadd.f32 %v1560, %v1503
        %v1562 = vadd.f32 %v1561, %v1505
        %v1563 = vadd.f32 %v1562, %v1544
        %v1564 = vadd.f32 %v1563, %v1546
        %1565 = vadd.xlane.f32.xlu0 %v1564
        %v1566 = vpop.xlane.xlu0 %1565
        %v1567 = vmul.f32 %v1421, %v1421
        %v1568 = vmul.f32 %v1423, %v1423
        %v1569 = vmul.f32 %v1462, %v1462
        %v1570 = vmul.f32 %v1464, %v1464
        %v1571 = vmul.f32 %v1503, %v1503
        %v1572 = vmul.f32 %v1505, %v1505
        %v1573 = vmul.f32 %v1544, %v1544
        %v1574 = vmul.f32 %v1546, %v1546
        %v1575 = vadd.f32 %v1567, %v1568
        %v1576 = vadd.f32 %v1575, %v1569
        %v1577 = vadd.f32 %v1576, %v1570
        %v1578 = vadd.f32 %v1577, %v1571
        %v1579 = vadd.f32 %v1578, %v1572
        %v1580 = vadd.f32 %v1579, %v1573
        %v1581 = vadd.f32 %v1580, %v1574
        %1582 = vadd.xlane.f32.xlu0 %v1581
        %v1583 = vpop.xlane.xlu0 %1582
        %vm1584 = vcmask 7168
        %v1585 = vsel %vm1584, %v1566, %v1583
        %vm1586 = vcmask 15360
        %1587 = vst.msk [vmem:[%s253] sm:$0xff] %vm1586, %v1585
        %s1588 = sand.u32 %s120, 1
        %s1589 = scalar_lea.sflag [#allocation5], %s1588
        %s1590 = sand.u32 %s120, 1
        %s1591 = smul.addr %s1590, 64
        %s1592 = scalar_lea.vmem [#allocation6], %s1591
        %p1593 = scmp.lt.s32.totalorder %s23, 1
        %s1594 = scalar_select %p1593, %s23, 1
        %s1595 = smul.addr %s1594, 8
        %s1596 = scalar_lea.vmem %s5, %s1595
        // Predicated region
        $region41: #{tpu_custom_call.1} parent=35 // pred_check
          %p1597 = pneg %p130
        $region42: #{tpu_custom_call.1} parent=35 // pred_check_branch
          %1599 = sbr.rel (%p1597) target = $region44
        $region43: #{tpu_custom_call.1} parent=35 // pred_region
          %s1601 = ssub.s32 1024, 1024
          %1602 = vsyncadd %s1589, %s1601
          %s1603 = smul.addr %s23, 8
          %s1604 = smul.addr %s1603, 128
          %s1605 = scalar_lea.hbm %s4, %s1604
          %s1607 = sshll.u32 %s1592, 4
          %s1608 = int_to_ptr.vmem [resolvable:$true] %s1607
          %1610 = dma.vmem_to_hbm [thread:$0]  %s1608, 1024, %s1605, %s1589
        $region44: #{tpu_custom_call.1} parent=35 // pred_fallthru
          _
        // Predicated region
        $region45: #{tpu_custom_call.1} parent=35 // pred_check
          %p1611 = pneg %p156
        $region46: #{tpu_custom_call.1} parent=35 // pred_check_branch
          %1613 = sbr.rel (%p1611) target = $region48
        $region47: #{tpu_custom_call.1} parent=35 // pred_region
          _
        $region48: #{tpu_custom_call.1} parent=35 // pred_fallthru
          _
      $region36: #{tpu_custom_call.1} parent=5 // pred_fallthru
        _
      %p1614 = scmp.le.s32.totalorder 2, %s18
      // Predicated region
      $region49: #{tpu_custom_call.1} parent=5 // pred_check
        %p1615 = pneg %p1614
      $region50: #{tpu_custom_call.1} parent=5 // pred_check_branch
        %1617 = sbr.rel (%p1615) target = $region52
      $region51: #{tpu_custom_call.1} parent=5 // pred_region
        %s1618 = ssub.s32 %s18, 2
        // Predicated region
        $region53: #{tpu_custom_call.1} parent=51 // pred_check
          %p1619 = pneg %p136
        $region54: #{tpu_custom_call.1} parent=51 // pred_check_branch
          %1621 = sbr.rel (%p1619) target = $region56
        $region55: #{tpu_custom_call.1} parent=51 // pred_region
          %s1622 = sand.u32 %s121, 1
          %s1623 = scalar_lea.sflag [#allocation5], %s1622
          %s1624 = sand.u32 %s121, 1
          %s1625 = smul.addr %s1624, 64
          %s1626 = scalar_lea.vmem [#allocation6], %s1625
          %1627 = dma.done %s1623, 1024
        $region56: #{tpu_custom_call.1} parent=51 // pred_fallthru
          _
        // Predicated region
        $region57: #{tpu_custom_call.1} parent=51 // pred_check
          %p1628 = pneg %p162
        $region58: #{tpu_custom_call.1} parent=51 // pred_check_branch
          %1630 = sbr.rel (%p1628) target = $region60
        $region59: #{tpu_custom_call.1} parent=51 // pred_region
          %p1631 = scmp.lt.s32.totalorder %s24, 1
          %s1632 = scalar_select %p1631, %s24, 1
          %s1633 = smul.addr %s1632, 8
          %s1634 = scalar_lea.vmem %s5, %s1633
        $region60: #{tpu_custom_call.1} parent=51 // pred_fallthru
          _
      $region52: #{tpu_custom_call.1} parent=5 // pred_fallthru
        _
    $region6: #{tpu_custom_call.1} parent=1 // loop_footer
      %s22 = sadd.s32 1, %s18
    $region7: #{tpu_custom_call.1} parent=1 // loop_footer_branch
      %17 = sbr.rel target = $region3
    $region8: #{tpu_custom_call.1} parent=1 // loop_exit
      _
    %1635 = vsyncpa [#allocation4], 1
    %s1636 = scalar_lea.sflag [#allocation4], 1
    %1637 = vsyncpa %s1636, 1
    %1638 = vsyncpa [#allocation5], 1
    %s1639 = scalar_lea.sflag [#allocation5], 1
    %1640 = vsyncpa %s1639, 1

</llo_original>
